<compile_context>
chip_gen: v7x
topology: tpu7x:2x2x1
jax: 0.10.0
libtpu: 0.0.40
codegen_flags: <defaults>
</compile_context>

<pallas_src>
import functools
import numpy as np
import jax
import jax.numpy as jnp
from jax import lax
from jax.experimental import pallas as pl
from jax.experimental.pallas import tpu as pltpu


def _full_spec(shape):
    nd = len(shape)
    return pl.BlockSpec(shape, lambda i, _nd=nd: (0,) * _nd)


# --------------------------------------------------------------------------
# Fused kernel: all three losses in one pallas_call.
#   loss1 : prototypical log-softmax loss          (MXU matmul + VPU/XLU)
#   scl   : supervised contrastive loss, masked static-shape formulation
#   ce    : cross-entropy on count_outputs
# Output: (1, 128) f32, lanes [0:4] = (total, loss1, count_loss, scl_loss)
# --------------------------------------------------------------------------
def fused_loss_kernel(q_ref, p_ref, ql_ref, qc_ref, encc_ref, encr_ref,
                      cnt_ref, labc_ref, out_ref, *, temperature):
    f32 = jnp.float32

    # ---------------- loss1: prototypical log-softmax loss ----------------
    q = q_ref[...].astype(f32)          # [Q, D]
    p = p_ref[...].astype(f32)          # [N, D]
    ql = ql_ref[...].astype(f32)        # [Q, N]
    Q, D = q.shape
    N = p.shape[0]

    qp = lax.dot_general(q, p, (((1,), (1,)), ((), ())),
                         preferred_element_type=f32)                 # [Q, N]
    ones_row = jnp.ones((1, D), f32)
    p2 = lax.dot_general(ones_row, p * p, (((1,), (1,)), ((), ())),
                         preferred_element_type=f32)                 # [1, N]
    # log_softmax(-dists) is invariant to the per-row ||q||^2 term -> drop it.
    neg = 2.0 * qp - p2                                              # [Q, N]
    m1 = jnp.max(neg, axis=1, keepdims=True)
    lse1 = m1 + jnp.log(jnp.sum(jnp.exp(neg - m1), axis=1, keepdims=True))
    log_p_y = neg - lse1                                             # [Q, N]
    s1 = jnp.sum(-ql * log_p_y, axis=1, keepdims=True)               # [Q, 1]
    s1 = jnp.sum(s1, axis=0, keepdims=True)                          # [1, 1]
    loss1 = s1 / float(Q * N)

    # ---------------- scl: supervised contrastive (masked, static) --------
    qc = qc_ref[...].astype(f32)        # [M, D]  all bsz*numNWay candidates
    ec = encc_ref[...]                  # [M, 1]  int32: class j if valid else -1
    er = encr_ref[...]                  # [1, M]  int32: same, row layout
    M = qc.shape[0]

    nrm = jnp.sqrt(jnp.sum(qc * qc, axis=1, keepdims=True))
    fn = qc / jnp.maximum(nrm, 1e-12)
    raw = lax.dot_general(fn, fn, (((1,), (1,)), ((), ())),
                          preferred_element_type=f32) / temperature  # [M, M]

    v_col = (ec >= 0).astype(f32)                                    # [M, 1]
    v_row = (er >= 0).astype(f32)                                    # [1, M]
    row_i = lax.broadcasted_iota(jnp.int32, (M, M), 0)
    col_i = lax.broadcasted_iota(jnp.int32, (M, M), 1)
    offdiag = jnp.where(row_i == col_i, 0.0, 1.0)                    # [M, M]
    same = (ec == er).astype(f32)                                    # [M, M]
    pos_mask = same * offdiag * v_col * v_row
    col_mask = offdiag * v_row            # valid columns, diag removed

    # Row max of the cosine-similarity matrix is the diagonal (=1/T), so the
    # unmasked max equals the reference's masked max for every valid row.
    lmax = jnp.max(raw, axis=1, keepdims=True)
    logits = raw - lmax
    exp_logits = jnp.exp(logits) * col_mask
    denom = jnp.sum(exp_logits, axis=1, keepdims=True)
    log_prob = logits - jnp.log(jnp.maximum(denom, 1e-30))
    num = jnp.sum(pos_mask * log_prob, axis=1, keepdims=True)        # [M, 1]
    den = jnp.sum(pos_mask, axis=1, keepdims=True) + 1.0
    mlpp = num / den
    row_loss = -mlpp * v_col
    s_scl = jnp.sum(row_loss, axis=0, keepdims=True)                 # [1, 1]
    n_valid = jnp.sum(v_col, axis=0, keepdims=True)                  # [1, 1]
    scl = s_scl / jnp.maximum(n_valid, 1.0)

    # ---------------- count cross-entropy ---------------------------------
    x = cnt_ref[...].astype(f32)        # [B, C]
    lab = labc_ref[...]                 # [B, 1] int32
    B, C = x.shape
    m3 = jnp.max(x, axis=1, keepdims=True)
    lse3 = m3 + jnp.log(jnp.sum(jnp.exp(x - m3), axis=1, keepdims=True))
    cidx = lax.broadcasted_iota(jnp.int32, (B, C), 1)
    onehot = (cidx == lab).astype(f32)
    picked = jnp.sum(onehot * x, axis=1, keepdims=True)
    s3 = jnp.sum(lse3 - picked, axis=0, keepdims=True)               # [1, 1]
    count_loss = s3 / float(B)

    # ---------------- combine + single lane-dense store --------------------
    total = loss1 + 0.1 * count_loss + 0.01 * scl                    # [1, 1]
    lanes = lax.broadcasted_iota(jnp.int32, (1, 128), 1)
    out = (jnp.where(lanes == 0, total, 0.0)
           + jnp.where(lanes == 1, loss1, 0.0)
           + jnp.where(lanes == 2, count_loss, 0.0)
           + jnp.where(lanes == 3, scl, 0.0))
    out_ref[...] = out


def fused_losses(q_re, prototypes, query_labels, qc_flat, enc_col, enc_row,
                 count_outputs, labels_count, temperature):
    kernel = functools.partial(fused_loss_kernel, temperature=float(temperature))
    return pl.pallas_call(
        kernel,
        out_shape=jax.ShapeDtypeStruct((1, 128), jnp.float32),
        grid=(1,),
        in_specs=[_full_spec(q_re.shape),
                  _full_spec(prototypes.shape),
                  _full_spec(query_labels.shape),
                  _full_spec(qc_flat.shape),
                  _full_spec(enc_col.shape),
                  _full_spec(enc_row.shape),
                  _full_spec(count_outputs.shape),
                  _full_spec(labels_count.shape)],
        out_specs=_full_spec((1, 128)),
        compiler_params=pltpu.CompilerParams(
            dimension_semantics=("arbitrary",)),
    )(q_re, prototypes, query_labels, qc_flat, enc_col, enc_row,
      count_outputs, labels_count)


# --------------------------------------------------------------------------
# Glue: Loss_fn.forward loss path (fully jit-able, no host sync).
# --------------------------------------------------------------------------
def loss_fn_forward(model_outputs, labels, *, numNWay, numQShot, numKShot,
                    temperature):
    del numQShot  # query size is implied by the shapes
    prototypes, q_re, count_outputs, query_constrative = model_outputs
    labels_i = jnp.asarray(labels).astype(jnp.int32)         # [bsz, numNWay]
    support_size = numNWay * numKShot
    bsz, nway = labels_i.shape
    M = bsz * nway
    D = q_re.shape[1]

    query_labels = labels_i[support_size:, :].astype(jnp.float32)   # [Q, N]

    # Static-shape SupCon candidate set: every (i, j) slot, encoded as
    # class j when labels[i, j] == 1, else -1 (invalid).
    qc_flat = query_constrative.reshape(M, D).astype(jnp.float32)
    cls = jnp.tile(jnp.arange(nway, dtype=jnp.int32), bsz)          # [M]
    enc = jnp.where(labels_i.reshape(-1) == 1, cls, -1).astype(jnp.int32)
    enc_col = enc.reshape(M, 1)
    enc_row = enc.reshape(1, M)

    labels_count = jnp.minimum(jnp.sum(labels_i, axis=1) - 1, 4)
    labels_count = labels_count.astype(jnp.int32).reshape(bsz, 1)

    out = fused_losses(q_re.astype(jnp.float32),
                       prototypes.astype(jnp.float32),
                       query_labels, qc_flat, enc_col, enc_row,
                       count_outputs.astype(jnp.float32),
                       labels_count, temperature)
    total, loss1, count_loss, scl_loss = out[0, 0], out[0, 1], out[0, 2], out[0, 3]
    return total, (loss1, count_loss, scl_loss)


# --------------------------------------------------------------------------
# Pure-JAX reference (uses the original gather-based SupCon formulation).
# --------------------------------------------------------------------------
def reference_losses(prototypes, q_re, count_outputs, u_feat, u_lab,
                     query_labels, labels_count, temperature):
    dists = jnp.sum((q_re[:, None, :] - prototypes[None, :, :]) ** 2, axis=2)
    log_p_y = jax.nn.log_softmax(-dists, axis=1)
    loss1 = jnp.mean(-query_labels * log_p_y)

    fn = u_feat / jnp.maximum(
        jnp.linalg.norm(u_feat, axis=1, keepdims=True), 1e-12)
    logits = (fn @ fn.T) / temperature
    B = u_feat.shape[0]
    mask = (u_lab[:, None] == u_lab[None, :]).astype(jnp.float32)
    logits_mask = 1.0 - jnp.eye(B)
    mask = mask * logits_mask
    logits = logits - jnp.max(logits, axis=1, keepdims=True)
    exp_logits = jnp.exp(logits) * logits_mask
    log_prob = logits - jnp.log(jnp.sum(exp_logits, axis=1, keepdims=True))
    mlpp = jnp.sum(mask * log_prob, axis=1) / (jnp.sum(mask, axis=1) + 1.0)
    scl = jnp.mean(-mlpp)

    logce = jax.nn.log_softmax(count_outputs, axis=1)
    ce = -jnp.mean(logce[jnp.arange(count_outputs.shape[0]), labels_count])
    total = loss1 + 0.1 * ce + 0.01 * scl
    return total, loss1, ce, scl


if __name__ == "__main__":
    # args
    numNWay, numQShot, numKShot = 5, 2, 1
    temperature = 0.1
    D = 32
    num_count_classes = 5

    query_size = numNWay * numQShot          # 10
    support_size = numNWay * numKShot        # 5
    bsz = support_size + query_size          # 15

    # Deterministic multi-hot labels [bsz, numNWay], at least one 1 per row.
    labels_np = np.zeros((bsz, numNWay), dtype=np.int32)
    for i in range(bsz):
        labels_np[i, i % numNWay] = 1
        labels_np[i, (i + 2) % numNWay] = 1
        if i % 3 == 0:
            labels_np[i, (i + 4) % numNWay] = 1

    key = jax.random.PRNGKey(0)
    k1, k2, k3, k4 = jax.random.split(key, 4)
    prototypes = jax.random.normal(k1, (numNWay, D), dtype=jnp.float32)
    q_re = jax.random.normal(k2, (query_size, D), dtype=jnp.float32)
    count_outputs = jax.random.normal(k3, (bsz, num_count_classes),
                                      dtype=jnp.float32)
    query_constrative = jax.random.normal(k4, (bsz, numNWay, D),
                                          dtype=jnp.float32)

    model_outputs = (prototypes, q_re, count_outputs, query_constrative)
    loss_fn = jax.jit(functools.partial(
        loss_fn_forward, numNWay=numNWay, numQShot=numQShot,
        numKShot=numKShot, temperature=temperature))
    total, (loss1, count_loss, scl_loss) = loss_fn(
        model_outputs, jnp.asarray(labels_np))
    total = jax.block_until_ready(total)

    # Verify against a plain-JAX reference that mirrors the original torch
    # gather-based formulation.
    qc_np = np.asarray(query_constrative)
    u_feats, u_labs = [], []
    for i in range(bsz):
        for j in range(numNWay):
            if labels_np[i, j] == 1:
                u_feats.append(qc_np[i, j])
                u_labs.append(j)
    ref_total, ref_l1, ref_ce, ref_scl = reference_losses(
        prototypes, q_re, count_outputs,
        jnp.asarray(np.stack(u_feats), dtype=jnp.float32),
        jnp.asarray(np.asarray(u_labs, dtype=np.float32)),
        jnp.asarray(labels_np[support_size:], dtype=jnp.float32),
        jnp.asarray(np.minimum(labels_np.sum(axis=1) - 1, 4).astype(np.int32)),
        temperature)
    ref_total = jax.block_until_ready(ref_total)

    assert np.isfinite(float(total))
    np.testing.assert_allclose(float(loss1), float(ref_l1), rtol=1e-4, atol=1e-5)
    np.testing.assert_allclose(float(count_loss), float(ref_ce), rtol=1e-4, atol=1e-5)
    np.testing.assert_allclose(float(scl_loss), float(ref_scl), rtol=1e-4, atol=1e-5)
    np.testing.assert_allclose(float(total), float(ref_total), rtol=1e-4, atol=1e-5)
    print("KERNEL_OK")
</pallas_src>

<mosaic_0001>
module attributes {stable_mosaic.version = 11 : i64} {
  func.func @fused_loss_kernel(%arg0: i32, %arg1: memref<10x32xf32, #tpu.memory_space<vmem>>, %arg2: memref<5x32xf32, #tpu.memory_space<vmem>>, %arg3: memref<10x5xf32, #tpu.memory_space<vmem>>, %arg4: memref<75x32xf32, #tpu.memory_space<vmem>>, %arg5: memref<75x1xi32, #tpu.memory_space<vmem>>, %arg6: memref<1x75xi32, #tpu.memory_space<vmem>>, %arg7: memref<15x5xf32, #tpu.memory_space<vmem>>, %arg8: memref<15x1xi32, #tpu.memory_space<vmem>>, %arg9: memref<1x128xf32, #tpu.memory_space<vmem>>) attributes {dimension_semantics = [#tpu.dimension_semantics<arbitrary>], iteration_bounds = array<i64: 1>, scalar_prefetch = 0 : i64, scratch_operands = 0 : i64, tpu.core_type = #tpu.core_type<tc>, window_params = [{pipeline_mode = #tpu.pipeline_mode<synchronous>, transform_indices = @transform_0, window_bounds = array<i64: 10, 32>}, {pipeline_mode = #tpu.pipeline_mode<synchronous>, transform_indices = @transform_1, window_bounds = array<i64: 5, 32>}, {pipeline_mode = #tpu.pipeline_mode<synchronous>, transform_indices = @transform_2, window_bounds = array<i64: 10, 5>}, {pipeline_mode = #tpu.pipeline_mode<synchronous>, transform_indices = @transform_3, window_bounds = array<i64: 75, 32>}, {pipeline_mode = #tpu.pipeline_mode<synchronous>, transform_indices = @transform_4, window_bounds = array<i64: 75, 1>}, {pipeline_mode = #tpu.pipeline_mode<synchronous>, transform_indices = @transform_5, window_bounds = array<i64: 1, 75>}, {pipeline_mode = #tpu.pipeline_mode<synchronous>, transform_indices = @transform_6, window_bounds = array<i64: 15, 5>}, {pipeline_mode = #tpu.pipeline_mode<synchronous>, transform_indices = @transform_7, window_bounds = array<i64: 15, 1>}, {pipeline_mode = #tpu.pipeline_mode<synchronous>, transform_indices = @transform_8, window_bounds = array<i64: 1, 128>}]} {
    %c0 = arith.constant 0 : index
    %c0_0 = arith.constant 0 : index
    %0 = vector.load %arg1[%c0, %c0_0] : memref<10x32xf32, #tpu.memory_space<vmem>>, vector<10x32xf32>
    %c0_1 = arith.constant 0 : index
    %c0_2 = arith.constant 0 : index
    %1 = vector.load %arg2[%c0_1, %c0_2] : memref<5x32xf32, #tpu.memory_space<vmem>>, vector<5x32xf32>
    %c0_3 = arith.constant 0 : index
    %c0_4 = arith.constant 0 : index
    %2 = vector.load %arg3[%c0_3, %c0_4] : memref<10x5xf32, #tpu.memory_space<vmem>>, vector<10x5xf32>
    %cst = arith.constant dense<0.000000e+00> : vector<10x5xf32>
    %3 = tpu.matmul %0, %1, %cst {dimension_numbers = #tpu.dot_dimension_numbers<[1], [1], [0], [0], [0, 0, 1, 0], [], []>} : vector<10x32xf32>, vector<5x32xf32>, vector<10x5xf32> -> vector<10x5xf32>
    %cst_5 = arith.constant 1.000000e+00 : f32
    %4 = vector.broadcast %cst_5 : f32 to vector<1x32xf32>
    %5 = arith.mulf %1, %1 : vector<5x32xf32>
    %cst_6 = arith.constant dense<0.000000e+00> : vector<1x5xf32>
    %6 = tpu.matmul %4, %5, %cst_6 {dimension_numbers = #tpu.dot_dimension_numbers<[1], [1], [0], [0], [0, 0, 1, 0], [], []>} : vector<1x32xf32>, vector<5x32xf32>, vector<1x5xf32> -> vector<1x5xf32>
    %cst_7 = arith.constant 2.000000e+00 : f32
    %7 = vector.broadcast %cst_7 : f32 to vector<10x5xf32>
    %8 = arith.mulf %7, %3 : vector<10x5xf32>
    %9 = vector.broadcast %6 : vector<1x5xf32> to vector<10x5xf32>
    %10 = arith.subf %8, %9 : vector<10x5xf32>
    %cst_8 = arith.constant dense<0xFF800000> : vector<10xf32>
    %11 = vector.multi_reduction <maximumf>, %10, %cst_8 [1] : vector<10x5xf32> to vector<10xf32>
    %12 = vector.shape_cast %11 : vector<10xf32> to vector<10x1xf32>
    %13 = vector.broadcast %12 : vector<10x1xf32> to vector<10x5xf32>
    %14 = arith.subf %10, %13 : vector<10x5xf32>
    %15 = math.exp %14 : vector<10x5xf32>
    %cst_9 = arith.constant dense<0.000000e+00> : vector<10xf32>
    %16 = vector.multi_reduction <add>, %15, %cst_9 [1] : vector<10x5xf32> to vector<10xf32>
    %17 = vector.shape_cast %16 : vector<10xf32> to vector<10x1xf32>
    %18 = math.log %17 : vector<10x1xf32>
    %19 = arith.addf %12, %18 : vector<10x1xf32>
    %20 = vector.broadcast %19 : vector<10x1xf32> to vector<10x5xf32>
    %21 = arith.subf %10, %20 : vector<10x5xf32>
    %cst_10 = arith.constant 0.000000e+00 : f32
    %22 = vector.broadcast %cst_10 : f32 to vector<10x5xf32>
    %23 = arith.subf %22, %2 : vector<10x5xf32>
    %24 = arith.mulf %23, %21 : vector<10x5xf32>
    %cst_11 = arith.constant dense<0.000000e+00> : vector<10xf32>
    %25 = vector.multi_reduction <add>, %24, %cst_11 [1] : vector<10x5xf32> to vector<10xf32>
    %26 = vector.shape_cast %25 : vector<10xf32> to vector<10x1xf32>
    %cst_12 = arith.constant dense<0.000000e+00> : vector<1xf32>
    %27 = vector.multi_reduction <add>, %26, %cst_12 [0] : vector<10x1xf32> to vector<1xf32>
    %28 = vector.shape_cast %27 : vector<1xf32> to vector<1x1xf32>
    %cst_13 = arith.constant 5.000000e+01 : f32
    %29 = vector.broadcast %cst_13 : f32 to vector<1x1xf32>
    %30 = arith.divf %28, %29 : vector<1x1xf32>
    %c0_14 = arith.constant 0 : index
    %c0_15 = arith.constant 0 : index
    %31 = vector.load %arg4[%c0_14, %c0_15] : memref<75x32xf32, #tpu.memory_space<vmem>>, vector<75x32xf32>
    %c0_16 = arith.constant 0 : index
    %c0_17 = arith.constant 0 : index
    %32 = vector.load %arg5[%c0_16, %c0_17] : memref<75x1xi32, #tpu.memory_space<vmem>>, vector<75x1xi32>
    %c0_18 = arith.constant 0 : index
    %c0_19 = arith.constant 0 : index
    %33 = vector.load %arg6[%c0_18, %c0_19] : memref<1x75xi32, #tpu.memory_space<vmem>>, vector<1x75xi32>
    %34 = arith.mulf %31, %31 : vector<75x32xf32>
    %cst_20 = arith.constant dense<0.000000e+00> : vector<75xf32>
    %35 = vector.multi_reduction <add>, %34, %cst_20 [1] : vector<75x32xf32> to vector<75xf32>
    %36 = vector.shape_cast %35 : vector<75xf32> to vector<75x1xf32>
    %37 = math.sqrt %36 : vector<75x1xf32>
    %cst_21 = arith.constant 9.99999996E-13 : f32
    %38 = vector.broadcast %cst_21 : f32 to vector<75x1xf32>
    %39 = arith.maximumf %37, %38 : vector<75x1xf32>
    %40 = vector.broadcast %39 : vector<75x1xf32> to vector<75x32xf32>
    %41 = arith.divf %31, %40 : vector<75x32xf32>
    %cst_22 = arith.constant dense<0.000000e+00> : vector<75x75xf32>
    %42 = tpu.matmul %41, %41, %cst_22 {dimension_numbers = #tpu.dot_dimension_numbers<[1], [1], [0], [0], [0, 0, 1, 0], [], []>} : vector<75x32xf32>, vector<75x32xf32>, vector<75x75xf32> -> vector<75x75xf32>
    %cst_23 = arith.constant 1.000000e-01 : f32
    %43 = vector.broadcast %cst_23 : f32 to vector<75x75xf32>
    %44 = arith.divf %42, %43 : vector<75x75xf32>
    %c0_i32 = arith.constant 0 : i32
    %45 = vector.broadcast %c0_i32 : i32 to vector<75x1xi32>
    %46 = arith.cmpi sge, %32, %45 : vector<75x1xi32>
    %47 = arith.extui %46 : vector<75x1xi1> to vector<75x1xi32>
    %48 = arith.sitofp %47 : vector<75x1xi32> to vector<75x1xf32>
    %c0_i32_24 = arith.constant 0 : i32
    %49 = vector.broadcast %c0_i32_24 : i32 to vector<1x75xi32>
    %50 = arith.cmpi sge, %33, %49 : vector<1x75xi32>
    %51 = arith.extui %50 : vector<1x75xi1> to vector<1x75xi32>
    %52 = arith.sitofp %51 : vector<1x75xi32> to vector<1x75xf32>
    %53 = tpu.iota {dimensions = array<i32: 0>} : vector<75x75xi32>
    %54 = tpu.iota {dimensions = array<i32: 1>} : vector<75x75xi32>
    %55 = arith.cmpi eq, %53, %54 : vector<75x75xi32>
    %cst_25 = arith.constant 0.000000e+00 : f32
    %cst_26 = arith.constant 1.000000e+00 : f32
    %56 = vector.broadcast %cst_25 : f32 to vector<75x75xf32>
    %57 = vector.broadcast %cst_26 : f32 to vector<75x75xf32>
    %58 = arith.select %55, %56, %57 : vector<75x75xi1>, vector<75x75xf32>
    %59 = vector.broadcast %32 : vector<75x1xi32> to vector<75x75xi32>
    %60 = vector.broadcast %33 : vector<1x75xi32> to vector<75x75xi32>
    %61 = arith.cmpi eq, %59, %60 : vector<75x75xi32>
    %62 = arith.extui %61 : vector<75x75xi1> to vector<75x75xi32>
    %63 = arith.sitofp %62 : vector<75x75xi32> to vector<75x75xf32>
    %64 = arith.mulf %63, %58 : vector<75x75xf32>
    %65 = vector.broadcast %48 : vector<75x1xf32> to vector<75x75xf32>
    %66 = arith.mulf %64, %65 : vector<75x75xf32>
    %67 = vector.broadcast %52 : vector<1x75xf32> to vector<75x75xf32>
    %68 = arith.mulf %66, %67 : vector<75x75xf32>
    %69 = vector.broadcast %52 : vector<1x75xf32> to vector<75x75xf32>
    %70 = arith.mulf %58, %69 : vector<75x75xf32>
    %cst_27 = arith.constant dense<0xFF800000> : vector<75xf32>
    %71 = vector.multi_reduction <maximumf>, %44, %cst_27 [1] : vector<75x75xf32> to vector<75xf32>
    %72 = vector.shape_cast %71 : vector<75xf32> to vector<75x1xf32>
    %73 = vector.broadcast %72 : vector<75x1xf32> to vector<75x75xf32>
    %74 = arith.subf %44, %73 : vector<75x75xf32>
    %75 = math.exp %74 : vector<75x75xf32>
    %76 = arith.mulf %75, %70 : vector<75x75xf32>
    %cst_28 = arith.constant dense<0.000000e+00> : vector<75xf32>
    %77 = vector.multi_reduction <add>, %76, %cst_28 [1] : vector<75x75xf32> to vector<75xf32>
    %78 = vector.shape_cast %77 : vector<75xf32> to vector<75x1xf32>
    %cst_29 = arith.constant 1.000000e-30 : f32
    %79 = vector.broadcast %cst_29 : f32 to vector<75x1xf32>
    %80 = arith.maximumf %78, %79 : vector<75x1xf32>
    %81 = math.log %80 : vector<75x1xf32>
    %82 = vector.broadcast %81 : vector<75x1xf32> to vector<75x75xf32>
    %83 = arith.subf %74, %82 : vector<75x75xf32>
    %84 = arith.mulf %68, %83 : vector<75x75xf32>
    %cst_30 = arith.constant dense<0.000000e+00> : vector<75xf32>
    %85 = vector.multi_reduction <add>, %84, %cst_30 [1] : vector<75x75xf32> to vector<75xf32>
    %86 = vector.shape_cast %85 : vector<75xf32> to vector<75x1xf32>
    %cst_31 = arith.constant dense<0.000000e+00> : vector<75xf32>
    %87 = vector.multi_reduction <add>, %68, %cst_31 [1] : vector<75x75xf32> to vector<75xf32>
    %88 = vector.shape_cast %87 : vector<75xf32> to vector<75x1xf32>
    %cst_32 = arith.constant 1.000000e+00 : f32
    %89 = vector.broadcast %cst_32 : f32 to vector<75x1xf32>
    %90 = arith.addf %88, %89 : vector<75x1xf32>
    %91 = arith.divf %86, %90 : vector<75x1xf32>
    %cst_33 = arith.constant 0.000000e+00 : f32
    %92 = vector.broadcast %cst_33 : f32 to vector<75x1xf32>
    %93 = arith.subf %92, %91 : vector<75x1xf32>
    %94 = arith.mulf %93, %48 : vector<75x1xf32>
    %cst_34 = arith.constant dense<0.000000e+00> : vector<1xf32>
    %95 = vector.multi_reduction <add>, %94, %cst_34 [0] : vector<75x1xf32> to vector<1xf32>
    %96 = vector.shape_cast %95 : vector<1xf32> to vector<1x1xf32>
    %cst_35 = arith.constant dense<0.000000e+00> : vector<1xf32>
    %97 = vector.multi_reduction <add>, %48, %cst_35 [0] : vector<75x1xf32> to vector<1xf32>
    %98 = vector.shape_cast %97 : vector<1xf32> to vector<1x1xf32>
    %cst_36 = arith.constant 1.000000e+00 : f32
    %99 = vector.broadcast %cst_36 : f32 to vector<1x1xf32>
    %100 = arith.maximumf %98, %99 : vector<1x1xf32>
    %101 = arith.divf %96, %100 : vector<1x1xf32>
    %c0_37 = arith.constant 0 : index
    %c0_38 = arith.constant 0 : index
    %102 = vector.load %arg7[%c0_37, %c0_38] : memref<15x5xf32, #tpu.memory_space<vmem>>, vector<15x5xf32>
    %c0_39 = arith.constant 0 : index
    %c0_40 = arith.constant 0 : index
    %103 = vector.load %arg8[%c0_39, %c0_40] : memref<15x1xi32, #tpu.memory_space<vmem>>, vector<15x1xi32>
    %cst_41 = arith.constant dense<0xFF800000> : vector<15xf32>
    %104 = vector.multi_reduction <maximumf>, %102, %cst_41 [1] : vector<15x5xf32> to vector<15xf32>
    %105 = vector.shape_cast %104 : vector<15xf32> to vector<15x1xf32>
    %106 = vector.broadcast %105 : vector<15x1xf32> to vector<15x5xf32>
    %107 = arith.subf %102, %106 : vector<15x5xf32>
    %108 = math.exp %107 : vector<15x5xf32>
    %cst_42 = arith.constant dense<0.000000e+00> : vector<15xf32>
    %109 = vector.multi_reduction <add>, %108, %cst_42 [1] : vector<15x5xf32> to vector<15xf32>
    %110 = vector.shape_cast %109 : vector<15xf32> to vector<15x1xf32>
    %111 = math.log %110 : vector<15x1xf32>
    %112 = arith.addf %105, %111 : vector<15x1xf32>
    %113 = tpu.iota {dimensions = array<i32: 1>} : vector<15x5xi32>
    %114 = vector.broadcast %103 : vector<15x1xi32> to vector<15x5xi32>
    %115 = arith.cmpi eq, %113, %114 : vector<15x5xi32>
    %116 = arith.extui %115 : vector<15x5xi1> to vector<15x5xi32>
    %117 = arith.sitofp %116 : vector<15x5xi32> to vector<15x5xf32>
    %118 = arith.mulf %117, %102 : vector<15x5xf32>
    %cst_43 = arith.constant dense<0.000000e+00> : vector<15xf32>
    %119 = vector.multi_reduction <add>, %118, %cst_43 [1] : vector<15x5xf32> to vector<15xf32>
    %120 = vector.shape_cast %119 : vector<15xf32> to vector<15x1xf32>
    %121 = arith.subf %112, %120 : vector<15x1xf32>
    %cst_44 = arith.constant dense<0.000000e+00> : vector<1xf32>
    %122 = vector.multi_reduction <add>, %121, %cst_44 [0] : vector<15x1xf32> to vector<1xf32>
    %123 = vector.shape_cast %122 : vector<1xf32> to vector<1x1xf32>
    %cst_45 = arith.constant 1.500000e+01 : f32
    %124 = vector.broadcast %cst_45 : f32 to vector<1x1xf32>
    %125 = arith.divf %123, %124 : vector<1x1xf32>
    %cst_46 = arith.constant 1.000000e-01 : f32
    %126 = vector.broadcast %cst_46 : f32 to vector<1x1xf32>
    %127 = arith.mulf %126, %125 : vector<1x1xf32>
    %128 = arith.addf %30, %127 : vector<1x1xf32>
    %cst_47 = arith.constant 0.00999999977 : f32
    %129 = vector.broadcast %cst_47 : f32 to vector<1x1xf32>
    %130 = arith.mulf %129, %101 : vector<1x1xf32>
    %131 = arith.addf %128, %130 : vector<1x1xf32>
    %132 = tpu.iota {dimensions = array<i32: 1>} : vector<1x128xi32>
    %c0_i32_48 = arith.constant 0 : i32
    %133 = vector.broadcast %c0_i32_48 : i32 to vector<1x128xi32>
    %134 = arith.cmpi eq, %132, %133 : vector<1x128xi32>
    %cst_49 = arith.constant 0.000000e+00 : f32
    %135 = vector.shape_cast %131 : vector<1x1xf32> to vector<1x1xf32>
    %136 = vector.broadcast %135 : vector<1x1xf32> to vector<1x128xf32>
    %137 = vector.broadcast %cst_49 : f32 to vector<1x128xf32>
    %138 = arith.select %134, %136, %137 : vector<1x128xi1>, vector<1x128xf32>
    %c1_i32 = arith.constant 1 : i32
    %139 = vector.broadcast %c1_i32 : i32 to vector<1x128xi32>
    %140 = arith.cmpi eq, %132, %139 : vector<1x128xi32>
    %cst_50 = arith.constant 0.000000e+00 : f32
    %141 = vector.shape_cast %30 : vector<1x1xf32> to vector<1x1xf32>
    %142 = vector.broadcast %141 : vector<1x1xf32> to vector<1x128xf32>
    %143 = vector.broadcast %cst_50 : f32 to vector<1x128xf32>
    %144 = arith.select %140, %142, %143 : vector<1x128xi1>, vector<1x128xf32>
    %145 = arith.addf %138, %144 : vector<1x128xf32>
    %c2_i32 = arith.constant 2 : i32
    %146 = vector.broadcast %c2_i32 : i32 to vector<1x128xi32>
    %147 = arith.cmpi eq, %132, %146 : vector<1x128xi32>
    %cst_51 = arith.constant 0.000000e+00 : f32
    %148 = vector.shape_cast %125 : vector<1x1xf32> to vector<1x1xf32>
    %149 = vector.broadcast %148 : vector<1x1xf32> to vector<1x128xf32>
    %150 = vector.broadcast %cst_51 : f32 to vector<1x128xf32>
    %151 = arith.select %147, %149, %150 : vector<1x128xi1>, vector<1x128xf32>
    %152 = arith.addf %145, %151 : vector<1x128xf32>
    %c3_i32 = arith.constant 3 : i32
    %153 = vector.broadcast %c3_i32 : i32 to vector<1x128xi32>
    %154 = arith.cmpi eq, %132, %153 : vector<1x128xi32>
    %cst_52 = arith.constant 0.000000e+00 : f32
    %155 = vector.shape_cast %101 : vector<1x1xf32> to vector<1x1xf32>
    %156 = vector.broadcast %155 : vector<1x1xf32> to vector<1x128xf32>
    %157 = vector.broadcast %cst_52 : f32 to vector<1x128xf32>
    %158 = arith.select %154, %156, %157 : vector<1x128xi1>, vector<1x128xf32>
    %159 = arith.addf %152, %158 : vector<1x128xf32>
    %c0_53 = arith.constant 0 : index
    %c0_54 = arith.constant 0 : index
    %160 = vector.load %arg9[%c0_53, %c0_54] : memref<1x128xf32, #tpu.memory_space<vmem>>, vector<1x128xf32>
    tpu.vector_store %arg9[%c0_53, %c0_54], %159 {strides = array<i32>} : memref<1x128xf32, #tpu.memory_space<vmem>>, vector<1x128xf32>,
    return
  }
  func.func @transform_0(%arg0: i32) -> (i32, i32) {
    %c0_i32 = arith.constant 0 : i32
    %c0_i32_0 = arith.constant 0 : i32
    %c0_i32_1 = arith.constant 0 : i32
    return %c0_i32, %c0_i32_0 : i32, i32
  }
  func.func @transform_1(%arg0: i32) -> (i32, i32) {
    %c0_i32 = arith.constant 0 : i32
    %c0_i32_0 = arith.constant 0 : i32
    %c0_i32_1 = arith.constant 0 : i32
    return %c0_i32, %c0_i32_0 : i32, i32
  }
  func.func @transform_2(%arg0: i32) -> (i32, i32) {
    %c0_i32 = arith.constant 0 : i32
    %c0_i32_0 = arith.constant 0 : i32
    %c0_i32_1 = arith.constant 0 : i32
    return %c0_i32, %c0_i32_0 : i32, i32
  }
  func.func @transform_3(%arg0: i32) -> (i32, i32) {
    %c0_i32 = arith.constant 0 : i32
    %c0_i32_0 = arith.constant 0 : i32
    %c0_i32_1 = arith.constant 0 : i32
    return %c0_i32, %c0_i32_0 : i32, i32
  }
  func.func @transform_4(%arg0: i32) -> (i32, i32) {
    %c0_i32 = arith.constant 0 : i32
    %c0_i32_0 = arith.constant 0 : i32
    %c0_i32_1 = arith.constant 0 : i32
    return %c0_i32, %c0_i32_0 : i32, i32
  }
  func.func @transform_5(%arg0: i32) -> (i32, i32) {
    %c0_i32 = arith.constant 0 : i32
    %c0_i32_0 = arith.constant 0 : i32
    %c0_i32_1 = arith.constant 0 : i32
    return %c0_i32, %c0_i32_0 : i32, i32
  }
  func.func @transform_6(%arg0: i32) -> (i32, i32) {
    %c0_i32 = arith.constant 0 : i32
    %c0_i32_0 = arith.constant 0 : i32
    %c0_i32_1 = arith.constant 0 : i32
    return %c0_i32, %c0_i32_0 : i32, i32
  }
  func.func @transform_7(%arg0: i32) -> (i32, i32) {
    %c0_i32 = arith.constant 0 : i32
    %c0_i32_0 = arith.constant 0 : i32
    %c0_i32_1 = arith.constant 0 : i32
    return %c0_i32, %c0_i32_0 : i32, i32
  }
  func.func @transform_8(%arg0: i32) -> (i32, i32) {
    %c0_i32 = arith.constant 0 : i32
    %c0_i32_0 = arith.constant 0 : i32
    %c0_i32_1 = arith.constant 0 : i32
    return %c0_i32, %c0_i32_0 : i32, i32
  }
}

</mosaic_0001>

<llo_original>
// kernel: loss_fn_forward.1
$region0: #{loss_fn_forward.1}
  #allocation0 [shape = 'u32[]', space=smem, size = 0x4, offset = 0x4, fixed_abs, tag = 'smem constant byte address 0x4 - core index']
  #allocation1 [shape = 'u32[144,128]{1,0:T(1,128)}', space=vmem, size = 0x12000, scoped, tag = 'internal scratch']
  %s0 = inlined_call_operand.vmem [shape: f32[10,32], index: 0, kind: input, shape index: {}]
  %s1 = inlined_call_operand.vmem [shape: f32[5,32], index: 1, kind: input, shape index: {}]
  %s2 = inlined_call_operand.vmem [shape: f32[10,5], index: 2, kind: input, shape index: {}]
  %s3 = inlined_call_operand.vmem [shape: f32[75,32], index: 3, kind: input, shape index: {}]
  %s4 = inlined_call_operand.vmem [shape: s32[75,1], index: 4, kind: input, shape index: {}]
  %s5 = inlined_call_operand.vmem [shape: s32[1,75], index: 5, kind: input, shape index: {}]
  %s6 = inlined_call_operand.vmem [shape: f32[15,5], index: 6, kind: input, shape index: {}]
  %s7 = inlined_call_operand.vmem [shape: s32[15,1], index: 7, kind: input, shape index: {}]
  %s8 = inlined_call_operand.vmem [shape: f32[1,128], index: 8, kind: output, shape index: {}]
  %s9 = sld [smem:[#allocation0]]
  $region42: #{loss_fn_forward.1} parent=0
    _
  %s11 = ssub.s32 1, %s9
  %s12 = scalar_select 0, %s11, %s9
  // Predicated region
  $region2: #{loss_fn_forward.1} parent=0 // pred_check
    _
  $region3: #{loss_fn_forward.1} parent=0 // pred_check_branch
    %14 = sbr.rel (0) target = $region5
  $region4: #{loss_fn_forward.1} parent=0 // pred_region
    _
  $region5: #{loss_fn_forward.1} parent=0 // pred_fallthru
    _
  // Predicated region
  $region6: #{loss_fn_forward.1} parent=0 // pred_check
    _
  $region7: #{loss_fn_forward.1} parent=0 // pred_check_branch
    %16 = sbr.rel (0) target = $region9
  $region8: #{loss_fn_forward.1} parent=0 // pred_region
    _
  $region9: #{loss_fn_forward.1} parent=0 // pred_fallthru
    _
  // Predicated region
  $region10: #{loss_fn_forward.1} parent=0 // pred_check
    _
  $region11: #{loss_fn_forward.1} parent=0 // pred_check_branch
    %18 = sbr.rel (0) target = $region13
  $region12: #{loss_fn_forward.1} parent=0 // pred_region
    _
  $region13: #{loss_fn_forward.1} parent=0 // pred_fallthru
    _
  // Predicated region
  $region14: #{loss_fn_forward.1} parent=0 // pred_check
    _
  $region15: #{loss_fn_forward.1} parent=0 // pred_check_branch
    %20 = sbr.rel (0) target = $region17
  $region16: #{loss_fn_forward.1} parent=0 // pred_region
    _
  $region17: #{loss_fn_forward.1} parent=0 // pred_fallthru
    _
  // Predicated region
  $region18: #{loss_fn_forward.1} parent=0 // pred_check
    _
  $region19: #{loss_fn_forward.1} parent=0 // pred_check_branch
    %22 = sbr.rel (0) target = $region21
  $region20: #{loss_fn_forward.1} parent=0 // pred_region
    _
  $region21: #{loss_fn_forward.1} parent=0 // pred_fallthru
    _
  // Predicated region
  $region22: #{loss_fn_forward.1} parent=0 // pred_check
    _
  $region23: #{loss_fn_forward.1} parent=0 // pred_check_branch
    %24 = sbr.rel (0) target = $region25
  $region24: #{loss_fn_forward.1} parent=0 // pred_region
    _
  $region25: #{loss_fn_forward.1} parent=0 // pred_fallthru
    _
  // Predicated region
  $region26: #{loss_fn_forward.1} parent=0 // pred_check
    _
  $region27: #{loss_fn_forward.1} parent=0 // pred_check_branch
    %26 = sbr.rel (0) target = $region29
  $region28: #{loss_fn_forward.1} parent=0 // pred_region
    _
  $region29: #{loss_fn_forward.1} parent=0 // pred_fallthru
    _
  // Predicated region
  $region30: #{loss_fn_forward.1} parent=0 // pred_check
    _
  $region31: #{loss_fn_forward.1} parent=0 // pred_check_branch
    %28 = sbr.rel (0) target = $region33
  $region32: #{loss_fn_forward.1} parent=0 // pred_region
    _
  $region33: #{loss_fn_forward.1} parent=0 // pred_fallthru
    _
  %v29 = vld [vmem:[%s0] sm:$0xff]
  %v30 = vld [vmem:[%s0 + $0x8] sm:$0x3]
  %v31 = vld [vmem:[%s1] sm:$0x1f]
  %v32 = vld [vmem:[%s2] sm:$0xff]
  %v33 = vld [vmem:[%s2 + $0x8] sm:$0x3]
  %vm34 = vcmask 261120
  %v36 = vsel %vm34, %v29, 0
  %v39 = vsel %vm34, %v30, 0
  %v42 = vsel %vm34, %v31, 0
  %44 = vmatprep.subr.mxu0 0.0
  %45 = vmatpush1.xpose.msra.mxu0 %v42
  %46 = vmatprep.subr.mxu0 0.0
  %47 = vmatpush1.xpose.msra.mxu0 0.0
  %48 = vmatprep.subr.mxu0 0.0
  %49 = vmatpush1.xpose.msra.mxu0 0.0
  %50 = vmatprep.subr.mxu0 0.0
  %51 = vmatpush1.xpose.msra.mxu0 0.0
  %52 = vmatprep.subr.mxu0 0.0
  %53 = vmatpush1.xpose.msra.mxu0 0.0
  %54 = vmatprep.subr.mxu0 0.0
  %55 = vmatpush1.xpose.msra.mxu0 0.0
  %56 = vmatprep.subr.mxu0 0.0
  %57 = vmatpush1.xpose.msra.mxu0 0.0
  %58 = vmatprep.subr.mxu0 0.0
  %59 = vmatpush1.xpose.msra.mxu0 0.0
  %60 = vmatprep.subr.mxu0 0.0
  %61 = vmatpush1.xpose.msra.mxu0 0.0
  %62 = vmatprep.subr.mxu0 0.0
  %63 = vmatpush1.xpose.msra.mxu0 0.0
  %64 = vmatprep.subr.mxu0 0.0
  %65 = vmatpush1.xpose.msra.mxu0 0.0
  %66 = vmatprep.subr.mxu0 0.0
  %67 = vmatpush1.xpose.msra.mxu0 0.0
  %68 = vmatprep.subr.mxu0 0.0
  %69 = vmatpush1.xpose.msra.mxu0 0.0
  %70 = vmatprep.subr.mxu0 0.0
  %71 = vmatpush1.xpose.msra.mxu0 0.0
  %72 = vmatprep.subr.mxu0 0.0
  %73 = vmatpush1.xpose.msra.mxu0 0.0
  %74 = vmatprep.subr.mxu0 0.0
  %75 = vmatpush1.xpose.msra.mxu0 0.0
  %76 = vmatprep.subr.mxu0 0.0
  %77 = vmatpush1.xpose.msra.mxu0 0.0
  %78 = vmatprep.subr.mxu0 0.0
  %79 = vmatpush1.xpose.msra.mxu0 0.0
  %80 = vmatprep.subr.mxu0 0.0
  %81 = vmatpush1.xpose.msra.mxu0 0.0
  %82 = vmatprep.subr.mxu0 0.0
  %83 = vmatpush1.xpose.msra.mxu0 0.0
  %84 = vmatprep.subr.mxu0 0.0
  %85 = vmatpush1.xpose.msra.mxu0 0.0
  %86 = vmatprep.subr.mxu0 0.0
  %87 = vmatpush1.xpose.msra.mxu0 0.0
  %88 = vmatprep.subr.mxu0 0.0
  %89 = vmatpush1.xpose.msra.mxu0 0.0
  %90 = vmatprep.subr.mxu0 0.0
  %91 = vmatpush1.xpose.msra.mxu0 0.0
  %92 = vmatprep.subr.mxu0 0.0
  %93 = vmatpush1.xpose.msra.mxu0 0.0
  %94 = vmatprep.subr.mxu0 0.0
  %95 = vmatpush1.xpose.msra.mxu0 0.0
  %96 = vmatprep.subr.mxu0 0.0
  %97 = vmatpush1.xpose.msra.mxu0 0.0
  %98 = vmatprep.subr.mxu0 0.0
  %99 = vmatpush1.xpose.msra.mxu0 0.0
  %100 = vmatprep.subr.mxu0 0.0
  %101 = vmatpush1.xpose.msra.mxu0 0.0
  %102 = vmatprep.subr.mxu0 0.0
  %103 = vmatpush1.xpose.msra.mxu0 0.0
  %104 = vmatprep.subr.mxu0 0.0
  %105 = vmatpush1.xpose.msra.mxu0 0.0
  %106 = vmatprep.subr.mxu0 0.0
  %107 = vmatpush1.xpose.msra.mxu0 0.0
  %108 = vmatprep.mubr.f32.mxu0 0.0
  %109 = vmatmul.mubr.f32.gmra.mrb[0].mxu0 %v36
  %v110 = vpop.f32.mrb[0].mxu0
  %v111 = vadd.f32 0.0, %v110
  %v112 = vpop.f32.mrb[0].mxu0
  %113 = vmatprep.mubr.f32.mxu0 0.0
  %114 = vmatmul.mubr.f32.gmra.mrb[0].mxu0 %v39
  %v115 = vpop.f32.mrb[0].mxu0
  %v116 = vadd.f32 0.0, %v115
  %v117 = vpop.f32.mrb[0].mxu0
  %118 = vdwg.mxu0
  %v119 = vmul.f32 %v31, %v31
  %v121 = vsel %vm34, 1.0, 0
  %v124 = vsel %vm34, %v119, 0
  %126 = vmatprep.subr.mxu0 0.0
  %127 = vmatpush1.xpose.msra.mxu0 %v124
  %128 = vmatprep.subr.mxu0 0.0
  %129 = vmatpush1.xpose.msra.mxu0 0.0
  %130 = vmatprep.subr.mxu0 0.0
  %131 = vmatpush1.xpose.msra.mxu0 0.0
  %132 = vmatprep.subr.mxu0 0.0
  %133 = vmatpush1.xpose.msra.mxu0 0.0
  %134 = vmatprep.subr.mxu0 0.0
  %135 = vmatpush1.xpose.msra.mxu0 0.0
  %136 = vmatprep.subr.mxu0 0.0
  %137 = vmatpush1.xpose.msra.mxu0 0.0
  %138 = vmatprep.subr.mxu0 0.0
  %139 = vmatpush1.xpose.msra.mxu0 0.0
  %140 = vmatprep.subr.mxu0 0.0
  %141 = vmatpush1.xpose.msra.mxu0 0.0
  %142 = vmatprep.subr.mxu0 0.0
  %143 = vmatpush1.xpose.msra.mxu0 0.0
  %144 = vmatprep.subr.mxu0 0.0
  %145 = vmatpush1.xpose.msra.mxu0 0.0
  %146 = vmatprep.subr.mxu0 0.0
  %147 = vmatpush1.xpose.msra.mxu0 0.0
  %148 = vmatprep.subr.mxu0 0.0
  %149 = vmatpush1.xpose.msra.mxu0 0.0
  %150 = vmatprep.subr.mxu0 0.0
  %151 = vmatpush1.xpose.msra.mxu0 0.0
  %152 = vmatprep.subr.mxu0 0.0
  %153 = vmatpush1.xpose.msra.mxu0 0.0
  %154 = vmatprep.subr.mxu0 0.0
  %155 = vmatpush1.xpose.msra.mxu0 0.0
  %156 = vmatprep.subr.mxu0 0.0
  %157 = vmatpush1.xpose.msra.mxu0 0.0
  %158 = vmatprep.subr.mxu0 0.0
  %159 = vmatpush1.xpose.msra.mxu0 0.0
  %160 = vmatprep.subr.mxu0 0.0
  %161 = vmatpush1.xpose.msra.mxu0 0.0
  %162 = vmatprep.subr.mxu0 0.0
  %163 = vmatpush1.xpose.msra.mxu0 0.0
  %164 = vmatprep.subr.mxu0 0.0
  %165 = vmatpush1.xpose.msra.mxu0 0.0
  %166 = vmatprep.subr.mxu0 0.0
  %167 = vmatpush1.xpose.msra.mxu0 0.0
  %168 = vmatprep.subr.mxu0 0.0
  %169 = vmatpush1.xpose.msra.mxu0 0.0
  %170 = vmatprep.subr.mxu0 0.0
  %171 = vmatpush1.xpose.msra.mxu0 0.0
  %172 = vmatprep.subr.mxu0 0.0
  %173 = vmatpush1.xpose.msra.mxu0 0.0
  %174 = vmatprep.subr.mxu0 0.0
  %175 = vmatpush1.xpose.msra.mxu0 0.0
  %176 = vmatprep.subr.mxu0 0.0
  %177 = vmatpush1.xpose.msra.mxu0 0.0
  %178 = vmatprep.subr.mxu0 0.0
  %179 = vmatpush1.xpose.msra.mxu0 0.0
  %180 = vmatprep.subr.mxu0 0.0
  %181 = vmatpush1.xpose.msra.mxu0 0.0
  %182 = vmatprep.subr.mxu0 0.0
  %183 = vmatpush1.xpose.msra.mxu0 0.0
  %184 = vmatprep.subr.mxu0 0.0
  %185 = vmatpush1.xpose.msra.mxu0 0.0
  %186 = vmatprep.subr.mxu0 0.0
  %187 = vmatpush1.xpose.msra.mxu0 0.0
  %188 = vmatprep.subr.mxu0 0.0
  %189 = vmatpush1.xpose.msra.mxu0 0.0
  %190 = vmatprep.mubr.f32.mxu0 0.0
  %191 = vmatmul.mubr.f32.gmra.mrb[0].mxu0 %v121
  %v192 = vpop.f32.mrb[0].mxu0
  %v193 = vadd.f32 0.0, %v192
  %v194 = vpop.f32.mrb[0].mxu0
  %195 = vdwg.mxu0
  %v196 = vmul.f32 %v111, 2.0
  %v197 = vmul.f32 %v116, 2.0
  %v198 = vlaneseq
  %v199 = vshrl.u32 %v198, 7
  %v200 = vsub.s32 0, %v199
  %v201 = vrot.slane %v193, %v200
  %v202 = vsub.f32 %v196, %v201
  %v203 = vsub.f32 %v197, %v201
  %vm204 = vcmask 39936
  %v205 = vsel %vm204, %v202, -inf
  %206 = vmax.xlane.f32.xlu0 %v205
  %v207 = vpop.xlane.xlu0 %206
  %vm208 = vcmask 33792
  %v209 = vsel %vm208, %v203, -inf
  %210 = vmax.xlane.f32.xlu0 %v209
  %v211 = vpop.xlane.xlu0 %210
  %v212 = vsub.f32 %v202, %v207
  %v213 = vsub.f32 %v203, %v211
  %v214 = vmul.f32 %v212, 1.442695
  %v215 = vpow.pop %v214
  %v216 = vmul.f32 %v213, 1.442695
  %v217 = vpow.pop %v216
  %v218 = vsel %vm204, %v215, 0.0
  %219 = vadd.xlane.f32.xlu0 %v218
  %v220 = vpop.xlane.xlu0 %219
  %v221 = vsel %vm208, %v217, 0.0
  %222 = vadd.xlane.f32.xlu0 %v221
  %v223 = vpop.xlane.xlu0 %222
  %v224 = vlog2.pop %v220
  %v225 = vmul.f32 %v224, 0.6931472
  %v226 = vlog2.pop %v223
  %v227 = vmul.f32 %v226, 0.6931472
  %v228 = vadd.f32 %v207, %v225
  %v229 = vadd.f32 %v211, %v227
  %v230 = vsub.f32 %v202, %v228
  %v231 = vsub.f32 %v203, %v229
  %v232 = vsub.f32 0.0, %v32
  %v233 = vsub.f32 0.0, %v33
  %v234 = vmul.f32 %v232, %v230
  %v235 = vmul.f32 %v233, %v231
  %v236 = vsel %vm204, %v234, 0.0
  %237 = vadd.xlane.f32.xlu0 %v236
  %v238 = vpop.xlane.xlu0 %237
  %v239 = vsel %vm208, %v235, 0.0
  %240 = vadd.xlane.f32.xlu0 %v239
  %v241 = vpop.xlane.xlu0 %240
  %vm242 = vcmask 1041408
  %v243 = vsel %vm242, %v241, 0.0
  %v244 = vadd.f32 %v238, %v243
  %v245 = vrot.slane %v244, 4
  %v246 = vadd.f32 %v244, %v245
  %v247 = vrot.slane %v246, 2
  %v248 = vadd.f32 %v246, %v247
  %v249 = vrot.slane %v248, 1
  %v250 = vadd.f32 %v248, %v249
  %v251 = vrcp.pop 50.0
  %v252 = vmul.f32 %v250, %v251
  %v253 = vld [vmem:[%s3] sm:$0xff]
  %v254 = vld [vmem:[%s3 + $0x8] sm:$0xff]
  %v255 = vld [vmem:[%s3 + $0x10] sm:$0xff]
  %v256 = vld [vmem:[%s3 + $0x18] sm:$0xff]
  %v257 = vld [vmem:[%s3 + $0x20] sm:$0xff]
  %v258 = vld [vmem:[%s3 + $0x28] sm:$0xff]
  %v259 = vld [vmem:[%s3 + $0x30] sm:$0xff]
  %v260 = vld [vmem:[%s3 + $0x38] sm:$0xff]
  %v261 = vld [vmem:[%s3 + $0x40] sm:$0xff]
  %v262 = vld [vmem:[%s3 + $0x48] sm:$0x7]
  %v263 = vld [vmem:[%s4] sm:$0xff]
  %v264 = vld [vmem:[%s4 + $0x8] sm:$0xff]
  %v265 = vld [vmem:[%s4 + $0x10] sm:$0xff]
  %v266 = vld [vmem:[%s4 + $0x18] sm:$0xff]
  %v267 = vld [vmem:[%s4 + $0x20] sm:$0xff]
  %v268 = vld [vmem:[%s4 + $0x28] sm:$0xff]
  %v269 = vld [vmem:[%s4 + $0x30] sm:$0xff]
  %v270 = vld [vmem:[%s4 + $0x38] sm:$0xff]
  %v271 = vld [vmem:[%s4 + $0x40] sm:$0xff]
  %v272 = vld [vmem:[%s4 + $0x48] sm:$0x7]
  %v273 = vld [vmem:[%s5] sm:$0x1]
  %v274 = vmul.f32 %v253, %v253
  %v275 = vmul.f32 %v254, %v254
  %v276 = vmul.f32 %v255, %v255
  %v277 = vmul.f32 %v256, %v256
  %v278 = vmul.f32 %v257, %v257
  %v279 = vmul.f32 %v258, %v258
  %v280 = vmul.f32 %v259, %v259
  %v281 = vmul.f32 %v260, %v260
  %v282 = vmul.f32 %v261, %v261
  %v283 = vmul.f32 %v262, %v262
  %v284 = vsel %vm34, %v274, 0.0
  %285 = vadd.xlane.f32.xlu0 %v284
  %v286 = vpop.xlane.xlu0 %285
  %v287 = vsel %vm34, %v275, 0.0
  %288 = vadd.xlane.f32.xlu0 %v287
  %v289 = vpop.xlane.xlu0 %288
  %v290 = vsel %vm34, %v276, 0.0
  %291 = vadd.xlane.f32.xlu0 %v290
  %v292 = vpop.xlane.xlu0 %291
  %v293 = vsel %vm34, %v277, 0.0
  %294 = vadd.xlane.f32.xlu0 %v293
  %v295 = vpop.xlane.xlu0 %294
  %v296 = vsel %vm34, %v278, 0.0
  %297 = vadd.xlane.f32.xlu0 %v296
  %v298 = vpop.xlane.xlu0 %297
  %v299 = vsel %vm34, %v279, 0.0
  %300 = vadd.xlane.f32.xlu0 %v299
  %v301 = vpop.xlane.xlu0 %300
  %v302 = vsel %vm34, %v280, 0.0
  %303 = vadd.xlane.f32.xlu0 %v302
  %v304 = vpop.xlane.xlu0 %303
  %v305 = vsel %vm34, %v281, 0.0
  %306 = vadd.xlane.f32.xlu0 %v305
  %v307 = vpop.xlane.xlu0 %306
  %v308 = vsel %vm34, %v282, 0.0
  %309 = vadd.xlane.f32.xlu0 %v308
  %v310 = vpop.xlane.xlu0 %309
  %vm311 = vcmask 256000
  %v312 = vsel %vm311, %v283, 0.0
  %313 = vadd.xlane.f32.xlu0 %v312
  %v314 = vpop.xlane.xlu0 %313
  %v315 = vrsqrt.pop %v286
  %v316 = vmul.f32 %v286, %v315
  %vm317 = vcmp.eq.f32.partialorder %v286, inf
  %v318 = vsel %vm317, %v286, %v316
  %vm319 = vcmp.eq.f32.partialorder %v286, 0.0
  %v320 = vand.u32 %v286, 2147483648
  %v321 = vsel %vm319, %v320, %v318
  %v322 = vrsqrt.pop %v289
  %v323 = vmul.f32 %v289, %v322
  %vm324 = vcmp.eq.f32.partialorder %v289, inf
  %v325 = vsel %vm324, %v289, %v323
  %vm326 = vcmp.eq.f32.partialorder %v289, 0.0
  %v327 = vand.u32 %v289, 2147483648
  %v328 = vsel %vm326, %v327, %v325
  %v329 = vrsqrt.pop %v292
  %v330 = vmul.f32 %v292, %v329
  %vm331 = vcmp.eq.f32.partialorder %v292, inf
  %v332 = vsel %vm331, %v292, %v330
  %vm333 = vcmp.eq.f32.partialorder %v292, 0.0
  %v334 = vand.u32 %v292, 2147483648
  %v335 = vsel %vm333, %v334, %v332
  %v336 = vrsqrt.pop %v295
  %v337 = vmul.f32 %v295, %v336
  %vm338 = vcmp.eq.f32.partialorder %v295, inf
  %v339 = vsel %vm338, %v295, %v337
  %vm340 = vcmp.eq.f32.partialorder %v295, 0.0
  %v341 = vand.u32 %v295, 2147483648
  %v342 = vsel %vm340, %v341, %v339
  %v343 = vrsqrt.pop %v298
  %v344 = vmul.f32 %v298, %v343
  %vm345 = vcmp.eq.f32.partialorder %v298, inf
  %v346 = vsel %vm345, %v298, %v344
  %vm347 = vcmp.eq.f32.partialorder %v298, 0.0
  %v348 = vand.u32 %v298, 2147483648
  %v349 = vsel %vm347, %v348, %v346
  %v350 = vrsqrt.pop %v301
  %v351 = vmul.f32 %v301, %v350
  %vm352 = vcmp.eq.f32.partialorder %v301, inf
  %v353 = vsel %vm352, %v301, %v351
  %vm354 = vcmp.eq.f32.partialorder %v301, 0.0
  %v355 = vand.u32 %v301, 2147483648
  %v356 = vsel %vm354, %v355, %v353
  %v357 = vrsqrt.pop %v304
  %v358 = vmul.f32 %v304, %v357
  %vm359 = vcmp.eq.f32.partialorder %v304, inf
  %v360 = vsel %vm359, %v304, %v358
  %vm361 = vcmp.eq.f32.partialorder %v304, 0.0
  %v362 = vand.u32 %v304, 2147483648
  %v363 = vsel %vm361, %v362, %v360
  %v364 = vrsqrt.pop %v307
  %v365 = vmul.f32 %v307, %v364
  %vm366 = vcmp.eq.f32.partialorder %v307, inf
  %v367 = vsel %vm366, %v307, %v365
  %vm368 = vcmp.eq.f32.partialorder %v307, 0.0
  %v369 = vand.u32 %v307, 2147483648
  %v370 = vsel %vm368, %v369, %v367
  %v371 = vrsqrt.pop %v310
  %v372 = vmul.f32 %v310, %v371
  %vm373 = vcmp.eq.f32.partialorder %v310, inf
  %v374 = vsel %vm373, %v310, %v372
  %vm375 = vcmp.eq.f32.partialorder %v310, 0.0
  %v376 = vand.u32 %v310, 2147483648
  %v377 = vsel %vm375, %v376, %v374
  %v378 = vrsqrt.pop %v314
  %v379 = vmul.f32 %v314, %v378
  %vm380 = vcmp.eq.f32.partialorder %v314, inf
  %v381 = vsel %vm380, %v314, %v379
  %vm382 = vcmp.eq.f32.partialorder %v314, 0.0
  %v383 = vand.u32 %v314, 2147483648
  %v384 = vsel %vm382, %v383, %v381
  %v385 = vmax.f32 %v321, 1e-12
  %v386 = vmax.f32 %v328, 1e-12
  %v387 = vmax.f32 %v335, 1e-12
  %v388 = vmax.f32 %v342, 1e-12
  %v389 = vmax.f32 %v349, 1e-12
  %v390 = vmax.f32 %v356, 1e-12
  %v391 = vmax.f32 %v363, 1e-12
  %v392 = vmax.f32 %v370, 1e-12
  %v393 = vmax.f32 %v377, 1e-12
  %v394 = vmax.f32 %v384, 1e-12
  %v395 = vrcp.pop %v385
  %v396 = vmul.f32 %v253, %v395
  %v397 = vrcp.pop %v386
  %v398 = vmul.f32 %v254, %v397
  %v399 = vrcp.pop %v387
  %v400 = vmul.f32 %v255, %v399
  %v401 = vrcp.pop %v388
  %v402 = vmul.f32 %v256, %v401
  %v403 = vrcp.pop %v389
  %v404 = vmul.f32 %v257, %v403
  %v405 = vrcp.pop %v390
  %v406 = vmul.f32 %v258, %v405
  %v407 = vrcp.pop %v391
  %v408 = vmul.f32 %v259, %v407
  %v409 = vrcp.pop %v392
  %v410 = vmul.f32 %v260, %v409
  %v411 = vrcp.pop %v393
  %v412 = vmul.f32 %v261, %v411
  %v413 = vrcp.pop %v394
  %v414 = vmul.f32 %v262, %v413
  %v416 = vsel %vm34, %v396, 0
  %v419 = vsel %vm34, %v398, 0
  %v422 = vsel %vm34, %v400, 0
  %v425 = vsel %vm34, %v402, 0
  %v428 = vsel %vm34, %v404, 0
  %v431 = vsel %vm34, %v406, 0
  %v434 = vsel %vm34, %v408, 0
  %v437 = vsel %vm34, %v410, 0
  %v440 = vsel %vm34, %v412, 0
  %v443 = vsel %vm34, %v414, 0
  %445 = vmatprep.subr.mxu0 0.0
  %446 = vmatpush1.xpose.msra.mxu0 %v416
  %447 = vmatprep.subr.mxu0 0.0
  %448 = vmatpush1.xpose.msra.mxu0 %v419
  %449 = vmatprep.subr.mxu0 0.0
  %450 = vmatpush1.xpose.msra.mxu0 %v422
  %451 = vmatprep.subr.mxu0 0.0
  %452 = vmatpush1.xpose.msra.mxu0 %v425
  %453 = vmatprep.subr.mxu0 0.0
  %454 = vmatpush1.xpose.msra.mxu0 %v428
  %455 = vmatprep.subr.mxu0 0.0
  %456 = vmatpush1.xpose.msra.mxu0 %v431
  %457 = vmatprep.subr.mxu0 0.0
  %458 = vmatpush1.xpose.msra.mxu0 %v434
  %459 = vmatprep.subr.mxu0 0.0
  %460 = vmatpush1.xpose.msra.mxu0 %v437
  %461 = vmatprep.subr.mxu0 0.0
  %462 = vmatpush1.xpose.msra.mxu0 %v440
  %463 = vmatprep.subr.mxu0 0.0
  %464 = vmatpush1.xpose.msra.mxu0 %v443
  %465 = vmatprep.subr.mxu0 0.0
  %466 = vmatpush1.xpose.msra.mxu0 0.0
  %467 = vmatprep.subr.mxu0 0.0
  %468 = vmatpush1.xpose.msra.mxu0 0.0
  %469 = vmatprep.subr.mxu0 0.0
  %470 = vmatpush1.xpose.msra.mxu0 0.0
  %471 = vmatprep.subr.mxu0 0.0
  %472 = vmatpush1.xpose.msra.mxu0 0.0
  %473 = vmatprep.subr.mxu0 0.0
  %474 = vmatpush1.xpose.msra.mxu0 0.0
  %475 = vmatprep.subr.mxu0 0.0
  %476 = vmatpush1.xpose.msra.mxu0 0.0
  %477 = vmatprep.subr.mxu0 0.0
  %478 = vmatpush1.xpose.msra.mxu0 0.0
  %479 = vmatprep.subr.mxu0 0.0
  %480 = vmatpush1.xpose.msra.mxu0 0.0
  %481 = vmatprep.subr.mxu0 0.0
  %482 = vmatpush1.xpose.msra.mxu0 0.0
  %483 = vmatprep.subr.mxu0 0.0
  %484 = vmatpush1.xpose.msra.mxu0 0.0
  %485 = vmatprep.subr.mxu0 0.0
  %486 = vmatpush1.xpose.msra.mxu0 0.0
  %487 = vmatprep.subr.mxu0 0.0
  %488 = vmatpush1.xpose.msra.mxu0 0.0
  %489 = vmatprep.subr.mxu0 0.0
  %490 = vmatpush1.xpose.msra.mxu0 0.0
  %491 = vmatprep.subr.mxu0 0.0
  %492 = vmatpush1.xpose.msra.mxu0 0.0
  %493 = vmatprep.subr.mxu0 0.0
  %494 = vmatpush1.xpose.msra.mxu0 0.0
  %495 = vmatprep.subr.mxu0 0.0
  %496 = vmatpush1.xpose.msra.mxu0 0.0
  %497 = vmatprep.subr.mxu0 0.0
  %498 = vmatpush1.xpose.msra.mxu0 0.0
  %499 = vmatprep.subr.mxu0 0.0
  %500 = vmatpush1.xpose.msra.mxu0 0.0
  %501 = vmatprep.subr.mxu0 0.0
  %502 = vmatpush1.xpose.msra.mxu0 0.0
  %503 = vmatprep.subr.mxu0 0.0
  %504 = vmatpush1.xpose.msra.mxu0 0.0
  %505 = vmatprep.subr.mxu0 0.0
  %506 = vmatpush1.xpose.msra.mxu0 0.0
  %507 = vmatprep.subr.mxu0 0.0
  %508 = vmatpush1.xpose.msra.mxu0 0.0
  %509 = vmatprep.mubr.f32.mxu0 0.0
  %510 = vmatmul.mubr.f32.gmra.mrb[0].mxu0 %v416
  %v511 = vpop.f32.mrb[0].mxu0
  %v512 = vadd.f32 0.0, %v511
  %v513 = vpop.f32.mrb[0].mxu0
  %514 = vmatprep.mubr.f32.mxu0 0.0
  %515 = vmatmul.mubr.f32.gmra.mrb[0].mxu0 %v419
  %v516 = vpop.f32.mrb[0].mxu0
  %v517 = vadd.f32 0.0, %v516
  %v518 = vpop.f32.mrb[0].mxu0
  %519 = vmatprep.mubr.f32.mxu0 0.0
  %520 = vmatmul.mubr.f32.gmra.mrb[0].mxu0 %v422
  %v521 = vpop.f32.mrb[0].mxu0
  %v522 = vadd.f32 0.0, %v521
  %v523 = vpop.f32.mrb[0].mxu0
  %524 = vmatprep.mubr.f32.mxu0 0.0
  %525 = vmatmul.mubr.f32.gmra.mrb[0].mxu0 %v425
  %v526 = vpop.f32.mrb[0].mxu0
  %v527 = vadd.f32 0.0, %v526
  %v528 = vpop.f32.mrb[0].mxu0
  %529 = vmatprep.mubr.f32.mxu0 0.0
  %530 = vmatmul.mubr.f32.gmra.mrb[0].mxu0 %v428
  %v531 = vpop.f32.mrb[0].mxu0
  %v532 = vadd.f32 0.0, %v531
  %v533 = vpop.f32.mrb[0].mxu0
  %534 = vmatprep.mubr.f32.mxu0 0.0
  %535 = vmatmul.mubr.f32.gmra.mrb[0].mxu0 %v431
  %v536 = vpop.f32.mrb[0].mxu0
  %v537 = vadd.f32 0.0, %v536
  %v538 = vpop.f32.mrb[0].mxu0
  %539 = vmatprep.mubr.f32.mxu0 0.0
  %540 = vmatmul.mubr.f32.gmra.mrb[0].mxu0 %v434
  %v541 = vpop.f32.mrb[0].mxu0
  %v542 = vadd.f32 0.0, %v541
  %v543 = vpop.f32.mrb[0].mxu0
  %544 = vmatprep.mubr.f32.mxu0 0.0
  %545 = vmatmul.mubr.f32.gmra.mrb[0].mxu0 %v437
  %v546 = vpop.f32.mrb[0].mxu0
  %v547 = vadd.f32 0.0, %v546
  %v548 = vpop.f32.mrb[0].mxu0
  %549 = vmatprep.mubr.f32.mxu0 0.0
  %550 = vmatmul.mubr.f32.gmra.mrb[0].mxu0 %v440
  %v551 = vpop.f32.mrb[0].mxu0
  %v552 = vadd.f32 0.0, %v551
  %v553 = vpop.f32.mrb[0].mxu0
  %554 = vmatprep.mubr.f32.mxu0 0.0
  %555 = vmatmul.mubr.f32.gmra.mrb[0].mxu0 %v443
  %v556 = vpop.f32.mrb[0].mxu0
  %v557 = vadd.f32 0.0, %v556
  %v558 = vpop.f32.mrb[0].mxu0
  %559 = vdwg.mxu0
  %v560 = vrcp.pop 0.1
  %v561 = vmul.f32 %v512, %v560
  %v562 = vmul.f32 %v517, %v560
  %v563 = vmul.f32 %v522, %v560
  %v564 = vmul.f32 %v527, %v560
  %v565 = vmul.f32 %v532, %v560
  %v566 = vmul.f32 %v537, %v560
  %v567 = vmul.f32 %v542, %v560
  %v568 = vmul.f32 %v547, %v560
  %v569 = vmul.f32 %v552, %v560
  %v570 = vmul.f32 %v557, %v560
  %vm571 = vcmp.ge.s32.totalorder %v263, 0
  %vm572 = vcmp.ge.s32.totalorder %v264, 0
  %vm573 = vcmp.ge.s32.totalorder %v265, 0
  %vm574 = vcmp.ge.s32.totalorder %v266, 0
  %vm575 = vcmp.ge.s32.totalorder %v267, 0
  %vm576 = vcmp.ge.s32.totalorder %v268, 0
  %vm577 = vcmp.ge.s32.totalorder %v269, 0
  %vm578 = vcmp.ge.s32.totalorder %v270, 0
  %vm579 = vcmp.ge.s32.totalorder %v271, 0
  %vm580 = vcmp.ge.s32.totalorder %v272, 0
  %v581 = vsel %vm571, 1, 0
  %v582 = vsel %vm572, 1, 0
  %v583 = vsel %vm573, 1, 0
  %v584 = vsel %vm574, 1, 0
  %v585 = vsel %vm575, 1, 0
  %v586 = vsel %vm576, 1, 0
  %v587 = vsel %vm577, 1, 0
  %v588 = vsel %vm578, 1, 0
  %v589 = vsel %vm579, 1, 0
  %v590 = vsel %vm580, 1, 0
  %v591 = vcvt.s32.f32 %v581
  %v592 = vcvt.s32.f32 %v582
  %v593 = vcvt.s32.f32 %v583
  %v594 = vcvt.s32.f32 %v584
  %v595 = vcvt.s32.f32 %v585
  %v596 = vcvt.s32.f32 %v586
  %v597 = vcvt.s32.f32 %v587
  %v598 = vcvt.s32.f32 %v588
  %v599 = vcvt.s32.f32 %v589
  %v600 = vcvt.s32.f32 %v590
  %vm601 = vcmp.ge.s32.totalorder %v273, 0
  %v602 = vsel %vm601, 1, 0
  %v603 = vcvt.s32.f32 %v602
  %v604 = vlaneseq
  %v605 = vshrl.u32 %v604, 7
  %v606 = vadd.s32 %v605, 8
  %v607 = vadd.s32 %v605, 16
  %v608 = vadd.s32 %v605, 24
  %v609 = vadd.s32 %v605, 32
  %v610 = vadd.s32 %v605, 40
  %v611 = vadd.s32 %v605, 48
  %v612 = vadd.s32 %v605, 56
  %v613 = vadd.s32 %v605, 64
  %v614 = vadd.s32 %v605, 72
  %v615 = vlaneseq
  %v616 = vand.u32 %v615, 127
  %vm617 = vcmp.eq.s32.totalorder %v605, %v616
  %vm618 = vcmp.eq.s32.totalorder %v606, %v616
  %vm619 = vcmp.eq.s32.totalorder %v607, %v616
  %vm620 = vcmp.eq.s32.totalorder %v608, %v616
  %vm621 = vcmp.eq.s32.totalorder %v609, %v616
  %vm622 = vcmp.eq.s32.totalorder %v610, %v616
  %vm623 = vcmp.eq.s32.totalorder %v611, %v616
  %vm624 = vcmp.eq.s32.totalorder %v612, %v616
  %vm625 = vcmp.eq.s32.totalorder %v613, %v616
  %vm626 = vcmp.eq.s32.totalorder %v614, %v616
  %v627 = vsel %vm617, 0.0, 1.0
  %v628 = vsel %vm618, 0.0, 1.0
  %v629 = vsel %vm619, 0.0, 1.0
  %v630 = vsel %vm620, 0.0, 1.0
  %v631 = vsel %vm621, 0.0, 1.0
  %v632 = vsel %vm622, 0.0, 1.0
  %v633 = vsel %vm623, 0.0, 1.0
  %v634 = vsel %vm624, 0.0, 1.0
  %v635 = vsel %vm625, 0.0, 1.0
  %v636 = vsel %vm626, 0.0, 1.0
  %637 = vset.pattern.permute.xlu0 0
  %638 = vperm.xlu0 %637, %v263
  %v639 = vpop.permute.xlu0 %638
  %640 = vset.pattern.permute.xlu0 0
  %641 = vperm.xlu0 %640, %v264
  %v642 = vpop.permute.xlu0 %641
  %643 = vset.pattern.permute.xlu0 0
  %644 = vperm.xlu0 %643, %v265
  %v645 = vpop.permute.xlu0 %644
  %646 = vset.pattern.permute.xlu0 0
  %647 = vperm.xlu0 %646, %v266
  %v648 = vpop.permute.xlu0 %647
  %649 = vset.pattern.permute.xlu0 0
  %650 = vperm.xlu0 %649, %v267
  %v651 = vpop.permute.xlu0 %650
  %652 = vset.pattern.permute.xlu0 0
  %653 = vperm.xlu0 %652, %v268
  %v654 = vpop.permute.xlu0 %653
  %655 = vset.pattern.permute.xlu0 0
  %656 = vperm.xlu0 %655, %v269
  %v657 = vpop.permute.xlu0 %656
  %658 = vset.pattern.permute.xlu0 0
  %659 = vperm.xlu0 %658, %v270
  %v660 = vpop.permute.xlu0 %659
  %661 = vset.pattern.permute.xlu0 0
  %662 = vperm.xlu0 %661, %v271
  %v663 = vpop.permute.xlu0 %662
  %664 = vset.pattern.permute.xlu0 0
  %665 = vperm.xlu0 %664, %v272
  %v666 = vpop.permute.xlu0 %665
  %v667 = vlaneseq
  %v668 = vshrl.u32 %v667, 7
  %v669 = vsub.s32 0, %v668
  %v670 = vrot.slane %v273, %v669
  %vm671 = vcmp.eq.s32.totalorder %v639, %v670
  %vm672 = vcmp.eq.s32.totalorder %v642, %v670
  %vm673 = vcmp.eq.s32.totalorder %v645, %v670
  %vm674 = vcmp.eq.s32.totalorder %v648, %v670
  %vm675 = vcmp.eq.s32.totalorder %v651, %v670
  %vm676 = vcmp.eq.s32.totalorder %v654, %v670
  %vm677 = vcmp.eq.s32.totalorder %v657, %v670
  %vm678 = vcmp.eq.s32.totalorder %v660, %v670
  %vm679 = vcmp.eq.s32.totalorder %v663, %v670
  %vm680 = vcmp.eq.s32.totalorder %v666, %v670
  %v681 = vsel %vm671, 1, 0
  %v682 = vsel %vm672, 1, 0
  %v683 = vsel %vm673, 1, 0
  %v684 = vsel %vm674, 1, 0
  %v685 = vsel %vm675, 1, 0
  %v686 = vsel %vm676, 1, 0
  %v687 = vsel %vm677, 1, 0
  %v688 = vsel %vm678, 1, 0
  %v689 = vsel %vm679, 1, 0
  %v690 = vsel %vm680, 1, 0
  %v691 = vcvt.s32.f32 %v681
  %v692 = vcvt.s32.f32 %v682
  %v693 = vcvt.s32.f32 %v683
  %v694 = vcvt.s32.f32 %v684
  %v695 = vcvt.s32.f32 %v685
  %v696 = vcvt.s32.f32 %v686
  %v697 = vcvt.s32.f32 %v687
  %v698 = vcvt.s32.f32 %v688
  %v699 = vcvt.s32.f32 %v689
  %v700 = vcvt.s32.f32 %v690
  %v701 = vmul.f32 %v691, %v627
  %v702 = vmul.f32 %v692, %v628
  %v703 = vmul.f32 %v693, %v629
  %v704 = vmul.f32 %v694, %v630
  %v705 = vmul.f32 %v695, %v631
  %v706 = vmul.f32 %v696, %v632
  %v707 = vmul.f32 %v697, %v633
  %v708 = vmul.f32 %v698, %v634
  %v709 = vmul.f32 %v699, %v635
  %v710 = vmul.f32 %v700, %v636
  %712 = vset.pattern.permute.xlu0 0
  %713 = vperm.xlu0 %712, %v591
  %v714 = vpop.permute.xlu0 %713
  %717 = vset.pattern.permute.xlu0 0
  %718 = vperm.xlu0 %717, %v592
  %v719 = vpop.permute.xlu0 %718
  %722 = vset.pattern.permute.xlu0 0
  %723 = vperm.xlu0 %722, %v593
  %v724 = vpop.permute.xlu0 %723
  %727 = vset.pattern.permute.xlu0 0
  %728 = vperm.xlu0 %727, %v594
  %v729 = vpop.permute.xlu0 %728
  %732 = vset.pattern.permute.xlu0 0
  %733 = vperm.xlu0 %732, %v595
  %v734 = vpop.permute.xlu0 %733
  %737 = vset.pattern.permute.xlu0 0
  %738 = vperm.xlu0 %737, %v596
  %v739 = vpop.permute.xlu0 %738
  %742 = vset.pattern.permute.xlu0 0
  %743 = vperm.xlu0 %742, %v597
  %v744 = vpop.permute.xlu0 %743
  %747 = vset.pattern.permute.xlu0 0
  %748 = vperm.xlu0 %747, %v598
  %v749 = vpop.permute.xlu0 %748
  %752 = vset.pattern.permute.xlu0 0
  %753 = vperm.xlu0 %752, %v599
  %v754 = vpop.permute.xlu0 %753
  %757 = vset.pattern.permute.xlu0 0
  %758 = vperm.xlu0 %757, %v600
  %v759 = vpop.permute.xlu0 %758
  %v761 = vmul.f32 %v701, %v714
  %v762 = vmul.f32 %v702, %v719
  %v763 = vmul.f32 %v703, %v724
  %v764 = vmul.f32 %v704, %v729
  %v765 = vmul.f32 %v705, %v734
  %v766 = vmul.f32 %v706, %v739
  %v767 = vmul.f32 %v707, %v744
  %v768 = vmul.f32 %v708, %v749
  %v769 = vmul.f32 %v709, %v754
  %v770 = vmul.f32 %v710, %v759
  %v772 = vlaneseq
  %v773 = vshrl.u32 %v772, 7
  %v774 = vsub.s32 0, %v773
  %v775 = vrot.slane %v603, %v774
  %v777 = vmul.f32 %v761, %v775
  %v778 = vmul.f32 %v762, %v775
  %v779 = vmul.f32 %v763, %v775
  %v780 = vmul.f32 %v764, %v775
  %v781 = vmul.f32 %v765, %v775
  %v782 = vmul.f32 %v766, %v775
  %v783 = vmul.f32 %v767, %v775
  %v784 = vmul.f32 %v768, %v775
  %v785 = vmul.f32 %v769, %v775
  %v786 = vmul.f32 %v770, %v775
  %v787 = vmul.f32 %v627, %v775
  %v788 = vmul.f32 %v628, %v775
  %v789 = vmul.f32 %v629, %v775
  %v790 = vmul.f32 %v630, %v775
  %v791 = vmul.f32 %v631, %v775
  %v792 = vmul.f32 %v632, %v775
  %v793 = vmul.f32 %v633, %v775
  %v794 = vmul.f32 %v634, %v775
  %v795 = vmul.f32 %v635, %v775
  %v796 = vmul.f32 %v636, %v775
  %vm797 = vcmask 613376
  %v798 = vsel %vm797, %v561, -inf
  %799 = vmax.xlane.f32.xlu0 %v798
  %v800 = vpop.xlane.xlu0 %799
  %v801 = vsel %vm797, %v562, -inf
  %802 = vmax.xlane.f32.xlu0 %v801
  %v803 = vpop.xlane.xlu0 %802
  %v804 = vsel %vm797, %v563, -inf
  %805 = vmax.xlane.f32.xlu0 %v804
  %v806 = vpop.xlane.xlu0 %805
  %v807 = vsel %vm797, %v564, -inf
  %808 = vmax.xlane.f32.xlu0 %v807
  %v809 = vpop.xlane.xlu0 %808
  %v810 = vsel %vm797, %v565, -inf
  %811 = vmax.xlane.f32.xlu0 %v810
  %v812 = vpop.xlane.xlu0 %811
  %v813 = vsel %vm797, %v566, -inf
  %814 = vmax.xlane.f32.xlu0 %v813
  %v815 = vpop.xlane.xlu0 %814
  %v816 = vsel %vm797, %v567, -inf
  %817 = vmax.xlane.f32.xlu0 %v816
  %v818 = vpop.xlane.xlu0 %817
  %v819 = vsel %vm797, %v568, -inf
  %820 = vmax.xlane.f32.xlu0 %v819
  %v821 = vpop.xlane.xlu0 %820
  %v822 = vsel %vm797, %v569, -inf
  %823 = vmax.xlane.f32.xlu0 %v822
  %v824 = vpop.xlane.xlu0 %823
  %vm825 = vcmask 608256
  %v826 = vsel %vm825, %v570, -inf
  %827 = vmax.xlane.f32.xlu0 %v826
  %v828 = vpop.xlane.xlu0 %827
  %v829 = vsub.f32 %v561, %v800
  %v830 = vsub.f32 %v562, %v803
  %v831 = vsub.f32 %v563, %v806
  %v832 = vsub.f32 %v564, %v809
  %v833 = vsub.f32 %v565, %v812
  %v834 = vsub.f32 %v566, %v815
  %v835 = vsub.f32 %v567, %v818
  %v836 = vsub.f32 %v568, %v821
  %v837 = vsub.f32 %v569, %v824
  %v838 = vsub.f32 %v570, %v828
  %v839 = vmul.f32 %v829, 1.442695
  %v840 = vpow.pop %v839
  %v841 = vmul.f32 %v830, 1.442695
  %v842 = vpow.pop %v841
  %v843 = vmul.f32 %v831, 1.442695
  %v844 = vpow.pop %v843
  %v845 = vmul.f32 %v832, 1.442695
  %v846 = vpow.pop %v845
  %v847 = vmul.f32 %v833, 1.442695
  %v848 = vpow.pop %v847
  %v849 = vmul.f32 %v834, 1.442695
  %v850 = vpow.pop %v849
  %v851 = vmul.f32 %v835, 1.442695
  %v852 = vpow.pop %v851
  %v853 = vmul.f32 %v836, 1.442695
  %v854 = vpow.pop %v853
  %v855 = vmul.f32 %v837, 1.442695
  %v856 = vpow.pop %v855
  %v857 = vmul.f32 %v838, 1.442695
  %v858 = vpow.pop %v857
  %v859 = vmul.f32 %v840, %v787
  %v860 = vmul.f32 %v842, %v788
  %v861 = vmul.f32 %v844, %v789
  %v862 = vmul.f32 %v846, %v790
  %v863 = vmul.f32 %v848, %v791
  %v864 = vmul.f32 %v850, %v792
  %v865 = vmul.f32 %v852, %v793
  %v866 = vmul.f32 %v854, %v794
  %v867 = vmul.f32 %v856, %v795
  %v868 = vmul.f32 %v858, %v796
  %v869 = vsel %vm797, %v859, 0.0
  %870 = vadd.xlane.f32.xlu0 %v869
  %v871 = vpop.xlane.xlu0 %870
  %v872 = vsel %vm797, %v860, 0.0
  %873 = vadd.xlane.f32.xlu0 %v872
  %v874 = vpop.xlane.xlu0 %873
  %v875 = vsel %vm797, %v861, 0.0
  %876 = vadd.xlane.f32.xlu0 %v875
  %v877 = vpop.xlane.xlu0 %876
  %v878 = vsel %vm797, %v862, 0.0
  %879 = vadd.xlane.f32.xlu0 %v878
  %v880 = vpop.xlane.xlu0 %879
  %v881 = vsel %vm797, %v863, 0.0
  %882 = vadd.xlane.f32.xlu0 %v881
  %v883 = vpop.xlane.xlu0 %882
  %v884 = vsel %vm797, %v864, 0.0
  %885 = vadd.xlane.f32.xlu0 %v884
  %v886 = vpop.xlane.xlu0 %885
  %v887 = vsel %vm797, %v865, 0.0
  %888 = vadd.xlane.f32.xlu0 %v887
  %v889 = vpop.xlane.xlu0 %888
  %v890 = vsel %vm797, %v866, 0.0
  %891 = vadd.xlane.f32.xlu0 %v890
  %v892 = vpop.xlane.xlu0 %891
  %v893 = vsel %vm797, %v867, 0.0
  %894 = vadd.xlane.f32.xlu0 %v893
  %v895 = vpop.xlane.xlu0 %894
  %v896 = vsel %vm825, %v868, 0.0
  %897 = vadd.xlane.f32.xlu0 %v896
  %v898 = vpop.xlane.xlu0 %897
  %v899 = vmax.f32 %v871, 1e-30
  %v900 = vmax.f32 %v874, 1e-30
  %v901 = vmax.f32 %v877, 1e-30
  %v902 = vmax.f32 %v880, 1e-30
  %v903 = vmax.f32 %v883, 1e-30
  %v904 = vmax.f32 %v886, 1e-30
  %v905 = vmax.f32 %v889, 1e-30
  %v906 = vmax.f32 %v892, 1e-30
  %v907 = vmax.f32 %v895, 1e-30
  %v908 = vmax.f32 %v898, 1e-30
  %v909 = vlog2.pop %v899
  %v910 = vmul.f32 %v909, 0.6931472
  %v911 = vlog2.pop %v900
  %v912 = vmul.f32 %v911, 0.6931472
  %v913 = vlog2.pop %v901
  %v914 = vmul.f32 %v913, 0.6931472
  %v915 = vlog2.pop %v902
  %v916 = vmul.f32 %v915, 0.6931472
  %v917 = vlog2.pop %v903
  %v918 = vmul.f32 %v917, 0.6931472
  %v919 = vlog2.pop %v904
  %v920 = vmul.f32 %v919, 0.6931472
  %v921 = vlog2.pop %v905
  %v922 = vmul.f32 %v921, 0.6931472
  %v923 = vlog2.pop %v906
  %v924 = vmul.f32 %v923, 0.6931472
  %v925 = vlog2.pop %v907
  %v926 = vmul.f32 %v925, 0.6931472
  %v927 = vlog2.pop %v908
  %v928 = vmul.f32 %v927, 0.6931472
  %v929 = vsub.f32 %v829, %v910
  %v930 = vsub.f32 %v830, %v912
  %v931 = vsub.f32 %v831, %v914
  %v932 = vsub.f32 %v832, %v916
  %v933 = vsub.f32 %v833, %v918
  %v934 = vsub.f32 %v834, %v920
  %v935 = vsub.f32 %v835, %v922
  %v936 = vsub.f32 %v836, %v924
  %v937 = vsub.f32 %v837, %v926
  %v938 = vsub.f32 %v838, %v928
  %v939 = vmul.f32 %v777, %v929
  %v940 = vmul.f32 %v778, %v930
  %v941 = vmul.f32 %v779, %v931
  %v942 = vmul.f32 %v780, %v932
  %v943 = vmul.f32 %v781, %v933
  %v944 = vmul.f32 %v782, %v934
  %v945 = vmul.f32 %v783, %v935
  %v946 = vmul.f32 %v784, %v936
  %v947 = vmul.f32 %v785, %v937
  %v948 = vmul.f32 %v786, %v938
  %v949 = vsel %vm797, %v939, 0.0
  %950 = vadd.xlane.f32.xlu0 %v949
  %v951 = vpop.xlane.xlu0 %950
  %v952 = vsel %vm797, %v940, 0.0
  %953 = vadd.xlane.f32.xlu0 %v952
  %v954 = vpop.xlane.xlu0 %953
  %v955 = vsel %vm797, %v941, 0.0
  %956 = vadd.xlane.f32.xlu0 %v955
  %v957 = vpop.xlane.xlu0 %956
  %v958 = vsel %vm797, %v942, 0.0
  %959 = vadd.xlane.f32.xlu0 %v958
  %v960 = vpop.xlane.xlu0 %959
  %v961 = vsel %vm797, %v943, 0.0
  %962 = vadd.xlane.f32.xlu0 %v961
  %v963 = vpop.xlane.xlu0 %962
  %v964 = vsel %vm797, %v944, 0.0
  %965 = vadd.xlane.f32.xlu0 %v964
  %v966 = vpop.xlane.xlu0 %965
  %v967 = vsel %vm797, %v945, 0.0
  %968 = vadd.xlane.f32.xlu0 %v967
  %v969 = vpop.xlane.xlu0 %968
  %v970 = vsel %vm797, %v946, 0.0
  %971 = vadd.xlane.f32.xlu0 %v970
  %v972 = vpop.xlane.xlu0 %971
  %v973 = vsel %vm797, %v947, 0.0
  %974 = vadd.xlane.f32.xlu0 %v973
  %v975 = vpop.xlane.xlu0 %974
  %v976 = vsel %vm825, %v948, 0.0
  %977 = vadd.xlane.f32.xlu0 %v976
  %v978 = vpop.xlane.xlu0 %977
  %v979 = vsel %vm797, %v777, 0.0
  %980 = vadd.xlane.f32.xlu0 %v979
  %v981 = vpop.xlane.xlu0 %980
  %v982 = vsel %vm797, %v778, 0.0
  %983 = vadd.xlane.f32.xlu0 %v982
  %v984 = vpop.xlane.xlu0 %983
  %v985 = vsel %vm797, %v779, 0.0
  %986 = vadd.xlane.f32.xlu0 %v985
  %v987 = vpop.xlane.xlu0 %986
  %v988 = vsel %vm797, %v780, 0.0
  %989 = vadd.xlane.f32.xlu0 %v988
  %v990 = vpop.xlane.xlu0 %989
  %v991 = vsel %vm797, %v781, 0.0
  %992 = vadd.xlane.f32.xlu0 %v991
  %v993 = vpop.xlane.xlu0 %992
  %v994 = vsel %vm797, %v782, 0.0
  %995 = vadd.xlane.f32.xlu0 %v994
  %v996 = vpop.xlane.xlu0 %995
  %v997 = vsel %vm797, %v783, 0.0
  %998 = vadd.xlane.f32.xlu0 %v997
  %v999 = vpop.xlane.xlu0 %998
  %v1000 = vsel %vm797, %v784, 0.0
  %1001 = vadd.xlane.f32.xlu0 %v1000
  %v1002 = vpop.xlane.xlu0 %1001
  %v1003 = vsel %vm797, %v785, 0.0
  %1004 = vadd.xlane.f32.xlu0 %v1003
  %v1005 = vpop.xlane.xlu0 %1004
  %v1006 = vsel %vm825, %v786, 0.0
  %1007 = vadd.xlane.f32.xlu0 %v1006
  %v1008 = vpop.xlane.xlu0 %1007
  %v1009 = vadd.f32 %v981, 1.0
  %v1010 = vadd.f32 %v984, 1.0
  %v1011 = vadd.f32 %v987, 1.0
  %v1012 = vadd.f32 %v990, 1.0
  %v1013 = vadd.f32 %v993, 1.0
  %v1014 = vadd.f32 %v996, 1.0
  %v1015 = vadd.f32 %v999, 1.0
  %v1016 = vadd.f32 %v1002, 1.0
  %v1017 = vadd.f32 %v1005, 1.0
  %v1018 = vadd.f32 %v1008, 1.0
  %v1019 = vrcp.pop %v1009
  %v1020 = vmul.f32 %v951, %v1019
  %v1021 = vrcp.pop %v1010
  %v1022 = vmul.f32 %v954, %v1021
  %v1023 = vrcp.pop %v1011
  %v1024 = vmul.f32 %v957, %v1023
  %v1025 = vrcp.pop %v1012
  %v1026 = vmul.f32 %v960, %v1025
  %v1027 = vrcp.pop %v1013
  %v1028 = vmul.f32 %v963, %v1027
  %v1029 = vrcp.pop %v1014
  %v1030 = vmul.f32 %v966, %v1029
  %v1031 = vrcp.pop %v1015
  %v1032 = vmul.f32 %v969, %v1031
  %v1033 = vrcp.pop %v1016
  %v1034 = vmul.f32 %v972, %v1033
  %v1035 = vrcp.pop %v1017
  %v1036 = vmul.f32 %v975, %v1035
  %v1037 = vrcp.pop %v1018
  %v1038 = vmul.f32 %v978, %v1037
  %v1039 = vsub.f32 0.0, %v1020
  %v1040 = vsub.f32 0.0, %v1022
  %v1041 = vsub.f32 0.0, %v1024
  %v1042 = vsub.f32 0.0, %v1026
  %v1043 = vsub.f32 0.0, %v1028
  %v1044 = vsub.f32 0.0, %v1030
  %v1045 = vsub.f32 0.0, %v1032
  %v1046 = vsub.f32 0.0, %v1034
  %v1047 = vsub.f32 0.0, %v1036
  %v1048 = vsub.f32 0.0, %v1038
  %v1049 = vmul.f32 %v1039, %v591
  %v1050 = vmul.f32 %v1040, %v592
  %v1051 = vmul.f32 %v1041, %v593
  %v1052 = vmul.f32 %v1042, %v594
  %v1053 = vmul.f32 %v1043, %v595
  %v1054 = vmul.f32 %v1044, %v596
  %v1055 = vmul.f32 %v1045, %v597
  %v1056 = vmul.f32 %v1046, %v598
  %v1057 = vmul.f32 %v1047, %v599
  %v1058 = vmul.f32 %v1048, %v600
  %vm1059 = vcmask 7168
  %v1060 = vsel %vm1059, %v1049, 0.0
  %v1061 = vsel %vm1059, %v1050, 0.0
  %v1062 = vadd.f32 %v1060, %v1061
  %v1063 = vsel %vm1059, %v1051, 0.0
  %v1064 = vadd.f32 %v1062, %v1063
  %v1065 = vsel %vm1059, %v1052, 0.0
  %v1066 = vadd.f32 %v1064, %v1065
  %v1067 = vsel %vm1059, %v1053, 0.0
  %v1068 = vadd.f32 %v1066, %v1067
  %v1069 = vsel %vm1059, %v1054, 0.0
  %v1070 = vadd.f32 %v1068, %v1069
  %v1071 = vsel %vm1059, %v1055, 0.0
  %v1072 = vadd.f32 %v1070, %v1071
  %v1073 = vsel %vm1059, %v1056, 0.0
  %v1074 = vadd.f32 %v1072, %v1073
  %v1075 = vsel %vm1059, %v1057, 0.0
  %v1076 = vadd.f32 %v1074, %v1075
  %vm1077 = vcmask 2048
  %v1078 = vsel %vm1077, %v1058, 0.0
  %v1079 = vadd.f32 %v1076, %v1078
  %v1080 = vrot.slane %v1079, 4
  %v1081 = vadd.f32 %v1079, %v1080
  %v1082 = vrot.slane %v1081, 2
  %v1083 = vadd.f32 %v1081, %v1082
  %v1084 = vrot.slane %v1083, 1
  %v1085 = vadd.f32 %v1083, %v1084
  %v1086 = vsel %vm1059, %v591, 0.0
  %v1087 = vsel %vm1059, %v592, 0.0
  %v1088 = vadd.f32 %v1086, %v1087
  %v1089 = vsel %vm1059, %v593, 0.0
  %v1090 = vadd.f32 %v1088, %v1089
  %v1091 = vsel %vm1059, %v594, 0.0
  %v1092 = vadd.f32 %v1090, %v1091
  %v1093 = vsel %vm1059, %v595, 0.0
  %v1094 = vadd.f32 %v1092, %v1093
  %v1095 = vsel %vm1059, %v596, 0.0
  %v1096 = vadd.f32 %v1094, %v1095
  %v1097 = vsel %vm1059, %v597, 0.0
  %v1098 = vadd.f32 %v1096, %v1097
  %v1099 = vsel %vm1059, %v598, 0.0
  %v1100 = vadd.f32 %v1098, %v1099
  %v1101 = vsel %vm1059, %v599, 0.0
  %v1102 = vadd.f32 %v1100, %v1101
  %v1103 = vsel %vm1077, %v600, 0.0
  %v1104 = vadd.f32 %v1102, %v1103
  %v1105 = vrot.slane %v1104, 4
  %v1106 = vadd.f32 %v1104, %v1105
  %v1107 = vrot.slane %v1106, 2
  %v1108 = vadd.f32 %v1106, %v1107
  %v1109 = vrot.slane %v1108, 1
  %v1110 = vadd.f32 %v1108, %v1109
  %v1111 = vmax.f32 %v1110, 1.0
  %v1112 = vrcp.pop %v1111
  %v1113 = vmul.f32 %v1085, %v1112
  %v1114 = vld [vmem:[%s6] sm:$0xff]
  %v1115 = vld [vmem:[%s6 + $0x8] sm:$0x7f]
  %v1116 = vld [vmem:[%s7] sm:$0xff]
  %v1117 = vld [vmem:[%s7 + $0x8] sm:$0x7f]
  %v1118 = vsel %vm204, %v1114, -inf
  %1119 = vmax.xlane.f32.xlu0 %v1118
  %v1120 = vpop.xlane.xlu0 %1119
  %vm1121 = vcmask 38912
  %v1122 = vsel %vm1121, %v1115, -inf
  %1123 = vmax.xlane.f32.xlu0 %v1122
  %v1124 = vpop.xlane.xlu0 %1123
  %v1125 = vsub.f32 %v1114, %v1120
  %v1126 = vsub.f32 %v1115, %v1124
  %v1127 = vmul.f32 %v1125, 1.442695
  %v1128 = vpow.pop %v1127
  %v1129 = vmul.f32 %v1126, 1.442695
  %v1130 = vpow.pop %v1129
  %v1131 = vsel %vm204, %v1128, 0.0
  %1132 = vadd.xlane.f32.xlu0 %v1131
  %v1133 = vpop.xlane.xlu0 %1132
  %v1134 = vsel %vm1121, %v1130, 0.0
  %1135 = vadd.xlane.f32.xlu0 %v1134
  %v1136 = vpop.xlane.xlu0 %1135
  %v1137 = vlog2.pop %v1133
  %v1138 = vmul.f32 %v1137, 0.6931472
  %v1139 = vlog2.pop %v1136
  %v1140 = vmul.f32 %v1139, 0.6931472
  %v1141 = vadd.f32 %v1120, %v1138
  %v1142 = vadd.f32 %v1124, %v1140
  %1143 = vset.pattern.permute.xlu0 0
  %1144 = vperm.xlu0 %1143, %v1116
  %v1145 = vpop.permute.xlu0 %1144
  %1146 = vset.pattern.permute.xlu0 0
  %1147 = vperm.xlu0 %1146, %v1117
  %v1148 = vpop.permute.xlu0 %1147
  %vm1149 = vcmp.eq.s32.totalorder %v616, %v1145
  %vm1150 = vcmp.eq.s32.totalorder %v616, %v1148
  %v1151 = vsel %vm1149, 1, 0
  %v1152 = vsel %vm1150, 1, 0
  %v1153 = vcvt.s32.f32 %v1151
  %v1154 = vcvt.s32.f32 %v1152
  %v1155 = vmul.f32 %v1153, %v1114
  %v1156 = vmul.f32 %v1154, %v1115
  %v1157 = vsel %vm204, %v1155, 0.0
  %1158 = vadd.xlane.f32.xlu0 %v1157
  %v1159 = vpop.xlane.xlu0 %1158
  %v1160 = vsel %vm1121, %v1156, 0.0
  %1161 = vadd.xlane.f32.xlu0 %v1160
  %v1162 = vpop.xlane.xlu0 %1161
  %v1163 = vsub.f32 %v1141, %v1159
  %v1164 = vsub.f32 %v1142, %v1162
  %vm1165 = vcmask 1046528
  %v1166 = vsel %vm1165, %v1164, 0.0
  %v1167 = vadd.f32 %v1163, %v1166
  %v1168 = vrot.slane %v1167, 4
  %v1169 = vadd.f32 %v1167, %v1168
  %v1170 = vrot.slane %v1169, 2
  %v1171 = vadd.f32 %v1169, %v1170
  %v1172 = vrot.slane %v1171, 1
  %v1173 = vadd.f32 %v1171, %v1172
  %v1174 = vrcp.pop 15.0
  %v1175 = vmul.f32 %v1173, %v1174
  %v1176 = vmul.f32 %v1175, 0.1
  %v1177 = vadd.f32 %v252, %v1176
  %v1178 = vmul.f32 %v1113, 0.01
  %v1179 = vadd.f32 %v1177, %v1178
  %vm1180 = vcmp.eq.s32.totalorder %v616, 0
  %1182 = vset.pattern.permute.xlu0 0
  %1183 = vperm.xlu0 %1182, %v1179
  %v1184 = vpop.permute.xlu0 %1183
  %v1186 = vsel %vm1180, %v1184, 0.0
  %vm1187 = vcmp.eq.s32.totalorder %v616, 1
  %v1188 = vsel %vm1187, %v252, 0.0
  %v1189 = vadd.f32 %v1186, %v1188
  %vm1190 = vcmp.eq.s32.totalorder %v616, 2
  %v1191 = vsel %vm1190, %v1175, 0.0
  %v1192 = vadd.f32 %v1189, %v1191
  %vm1193 = vcmp.eq.s32.totalorder %v616, 3
  %1195 = vset.pattern.permute.xlu0 0
  %1196 = vperm.xlu0 %1195, %v1113
  %v1197 = vpop.permute.xlu0 %1196
  %v1199 = vsel %vm1193, %v1197, 0.0
  %v1200 = vadd.f32 %v1192, %v1199
  %1201 = vst [vmem:[%s8] sm:$0x1] %v1200
  // Predicated region
  $region34: #{loss_fn_forward.1} parent=0 // pred_check
    _
  $region35: #{loss_fn_forward.1} parent=0 // pred_check_branch
    %1203 = sbr.rel (0) target = $region37
  $region36: #{loss_fn_forward.1} parent=0 // pred_region
    _
  $region37: #{loss_fn_forward.1} parent=0 // pred_fallthru
    _
  // Predicated region
  $region38: #{loss_fn_forward.1} parent=0 // pred_check
    _
  $region39: #{loss_fn_forward.1} parent=0 // pred_check_branch
    %1205 = sbr.rel (0) target = $region41
  $region40: #{loss_fn_forward.1} parent=0 // pred_region
    _
  $region41: #{loss_fn_forward.1} parent=0 // pred_fallthru
    _

</llo_original>
